<compile_context>
chip_gen: v7x
topology: tpu7x:2x2x1
jax: 0.10.0
libtpu: 0.0.40
codegen_flags: <defaults>
</compile_context>

<pallas_src>
import numpy as np
import jax
import jax.numpy as jnp
from jax import lax
from jax.experimental import pallas as pl
from jax.experimental.pallas import tpu as pltpu

# ------------------------- tiny CLIP text config ---------------------------
N_PROMPTS = 4      # batch of prompts
CTX_LEN   = 8      # context length T
WIDTH     = 32     # transformer width D
HEADS     = 4      # attention heads
HEAD_DIM  = WIDTH // HEADS
LAYERS    = 2      # transformer depth
EMBED_DIM = 16     # text_projection output dim
LN_EPS    = 1e-5
PROMPTS_PER_BLOCK = 2   # NB: prompts processed per grid step (raise at real size)


def _layer_norm(x, w, b):
    # x: (..., D); w, b: (1, D)
    mu = jnp.mean(x, axis=-1, keepdims=True)
    var = jnp.mean((x - mu) ** 2, axis=-1, keepdims=True)
    return (x - mu) * lax.rsqrt(var + LN_EPS) * w + b


# ------------------------------ fused kernel --------------------------------
def _text_encoder_kernel(eot_ref,                       # scalar prefetch (SMEM), (N,) int32
                         x0_ref, pos_ref, lnp_ref,
                         wqkv_ref, bqkv_ref, wo_ref, bo_ref,
                         wfc_ref, bfc_ref, wpr_ref, bpr_ref,
                         lnf_ref, proj_ref,
                         out_ref, x_sc, ctx_sc):
    i = pl.program_id(0)                 # prompt-block index ("parallel")
    l = pl.program_id(1)                 # layer index ("arbitrary", weights streamed)
    n_layers = pl.num_programs(1)

    R, D = x_sc.shape                    # R = NB * T flattened rows of this block
    T = pos_ref.shape[0]
    NB = R // T
    H = HEADS
    HD = D // H
    bf16 = jnp.bfloat16

    # ---- init carried activation with positional embedding at the first layer ----
    @pl.when(l == 0)
    def _():
        for b in range(NB):                                        # static unroll
            x_sc[b * T:(b + 1) * T, :] = x0_ref[b * T:(b + 1) * T, :] + pos_ref[...]

    # per-prompt (T, T) causal bias (diagonal always unmasked -> -1e30 is safe)
    row = lax.broadcasted_iota(jnp.int32, (T, T), 0)
    col = lax.broadcasted_iota(jnp.int32, (T, T), 1)
    bias = jnp.where(col <= row, 0.0, -1e30).astype(jnp.float32)

    x = x_sc[...]                                                   # (R, D) f32
    lnp = lnp_ref[0]                                                # (4, D)

    # ---- multi-head self-attention (pre-LN, fused QKV over all NB*T rows) ----
    h = _layer_norm(x, lnp[0:1], lnp[1:2])
    qkv = jnp.dot(h.astype(bf16), wqkv_ref[0],                      # wqkv pre-cast bf16
                  preferred_element_type=jnp.float32) + bqkv_ref[0]  # (R, 3D)

    for b in range(NB):                   # static unroll: attention is per prompt
        r0 = b * T
        for hh in range(H):               # static unroll over heads (tiny here)
            q = qkv[r0:r0 + T, hh * HD:(hh + 1) * HD]               # scale folded in wqkv
            k = qkv[r0:r0 + T, D + hh * HD:D + (hh + 1) * HD]
            v = qkv[r0:r0 + T, 2 * D + hh * HD:2 * D + (hh + 1) * HD]
            s = lax.dot_general(q.astype(bf16), k.astype(bf16),
                                dimension_numbers=(((1,), (1,)), ((), ())),
                                preferred_element_type=jnp.float32) + bias   # (T, T)
            s = s - jnp.max(s, axis=-1, keepdims=True)
            p = jnp.exp(s)
            p = p * pl.reciprocal(jnp.sum(p, axis=-1, keepdims=True), approx=True)
            ctx_sc[r0:r0 + T, hh * HD:(hh + 1) * HD] = jnp.dot(
                p.astype(bf16), v.astype(bf16), preferred_element_type=jnp.float32)

    # one full-contraction output projection over all rows (no per-head K=HD folding)
    x = x + jnp.dot(ctx_sc[...].astype(bf16), wo_ref[0],
                    preferred_element_type=jnp.float32) + bo_ref[0]

    # ---- MLP with QuickGELU (pre-LN) ----
    h2 = _layer_norm(x, lnp[2:3], lnp[3:4])
    f = jnp.dot(h2.astype(bf16), wfc_ref[0],
                preferred_element_type=jnp.float32) + bfc_ref[0]
    f = f * jax.nn.sigmoid(1.702 * f)
    x = x + jnp.dot(f.astype(bf16), wpr_ref[0],
                    preferred_element_type=jnp.float32) + bpr_ref[0]
    x_sc[...] = x

    # ---- head (last layer only): EOT row gather, ln_final, text projection ----
    @pl.when(l == n_layers - 1)
    def _():
        lnf = lnf_ref[...]                                          # (2, D)
        for b in range(NB):                                         # scalar-indexed gather
            idx = eot_ref[i * NB + b]
            ctx_sc[pl.ds(b, 1), :] = x_sc[pl.ds(b * T + idx, 1), :]  # reuse scratch rows
        pooled = _layer_norm(ctx_sc[0:NB, :], lnf[0:1], lnf[1:2])    # (NB, D)
        out_ref[0] = jnp.dot(pooled.astype(bf16), proj_ref[...],
                             preferred_element_type=jnp.float32)     # (NB, E)


# ------------------------------ param packing --------------------------------
def pack_params(params):
    """Pack per-layer weights into stacked slabs, fold the 1/sqrt(HD) attention scale
    into the Q projection, and pre-cast matmul weights to bf16.  Done ONCE, outside
    the jitted per-call wrapper."""
    layers = params['layers']
    scale = 1.0 / (HEAD_DIM ** 0.5)
    bf16 = jnp.bfloat16
    stack = lambda name: jnp.stack([lp[name] for lp in layers])
    packed = dict(
        pos=params['pos_emb'],                                                   # (T, D) f32
        lnp=jnp.stack([jnp.concatenate([lp['ln1_w'], lp['ln1_b'],
                                        lp['ln2_w'], lp['ln2_b']], axis=0)
                       for lp in layers]),                                       # (L, 4, D) f32
        wqkv=jnp.stack([jnp.concatenate([lp['wq'] * scale, lp['wk'], lp['wv']],
                                        axis=1) for lp in layers]).astype(bf16), # (L, D, 3D)
        bqkv=jnp.stack([jnp.concatenate([lp['bq'] * scale, lp['bk'], lp['bv']],
                                        axis=1) for lp in layers]),              # (L, 1, 3D) f32
        wo=stack('wo').astype(bf16), bo=stack('bo'),                             # (L,D,D),(L,1,D)
        wfc=stack('wfc').astype(bf16), bfc=stack('bfc'),                         # (L,D,4D),(L,1,4D)
        wpr=stack('wpr').astype(bf16), bpr=stack('bpr'),                         # (L,4D,D),(L,1,D)
        lnf=jnp.concatenate([params['ln_f_w'], params['ln_f_b']], axis=0),       # (2, D) f32
        proj=params['text_proj'].astype(bf16),                                   # (D, E)
    )
    return jax.device_put(packed)


# ------------------------------ wrapper --------------------------------------
def text_encoder_pallas(packed, prompts, tokenized_prompts, *, block_prompts=2):
    # prompts: (N, T, D) f32 (learned ctx + class token embeddings)
    # tokenized_prompts: (N, T) int32 token ids; EOT has the largest id (CLIP convention)
    N, T, D = prompts.shape
    NB = block_prompts
    assert N % NB == 0, "TODO(synk): pad the prompt axis when N % NB != 0"
    G = N // NB
    L = packed['wqkv'].shape[0]
    E = packed['proj'].shape[-1]

    eot_idx = jnp.argmax(tokenized_prompts, axis=-1).astype(jnp.int32)   # (N,) -> SMEM
    x0 = prompts.reshape(N * T, D)                                       # flattened rows

    grid_spec = pltpu.PrefetchScalarGridSpec(
        num_scalar_prefetch=1,                    # eot_idx lands in SMEM
        grid=(G, L),                              # (prompt blocks, layers)
        in_specs=[
            pl.BlockSpec((NB * T, D), lambda i, l, eot: (i, 0)),      # x0 (per prompt block)
            pl.BlockSpec((T, D),      lambda i, l, eot: (0, 0)),      # pos (fetched once)
            pl.BlockSpec((1, 4, D),   lambda i, l, eot: (l, 0, 0)),   # ln1/ln2 w,b (streamed)
            pl.BlockSpec((1, D, 3 * D), lambda i, l, eot: (l, 0, 0)),  # fused QKV weight
            pl.BlockSpec((1, 1, 3 * D), lambda i, l, eot: (l, 0, 0)),  # fused QKV bias
            pl.BlockSpec((1, D, D),     lambda i, l, eot: (l, 0, 0)),  # out-proj weight
            pl.BlockSpec((1, 1, D),     lambda i, l, eot: (l, 0, 0)),  # out-proj bias
            pl.BlockSpec((1, D, 4 * D), lambda i, l, eot: (l, 0, 0)),  # mlp fc weight
            pl.BlockSpec((1, 1, 4 * D), lambda i, l, eot: (l, 0, 0)),  # mlp fc bias
            pl.BlockSpec((1, 4 * D, D), lambda i, l, eot: (l, 0, 0)),  # mlp proj weight
            pl.BlockSpec((1, 1, D),     lambda i, l, eot: (l, 0, 0)),  # mlp proj bias
            pl.BlockSpec((2, D),        lambda i, l, eot: (0, 0)),     # ln_final w,b
            pl.BlockSpec((D, E),        lambda i, l, eot: (0, 0)),     # text_projection
        ],
        out_specs=pl.BlockSpec((1, NB, E), lambda i, l, eot: (i, 0, 0)),
        scratch_shapes=[pltpu.VMEM((NB * T, D), jnp.float32),   # x carried across layers
                        pltpu.VMEM((NB * T, D), jnp.float32)],  # per-head contexts / pooled rows
    )

    out = pl.pallas_call(
        _text_encoder_kernel,
        out_shape=jax.ShapeDtypeStruct((G, NB, E), jnp.float32),
        grid_spec=grid_spec,
        compiler_params=pltpu.CompilerParams(
            dimension_semantics=("parallel", "arbitrary"),   # prompts // cores, layers serial
            vmem_limit_bytes=32 * 1024 * 1024),
    )(eot_idx, x0, packed['pos'], packed['lnp'], packed['wqkv'], packed['bqkv'],
      packed['wo'], packed['bo'], packed['wfc'], packed['bfc'],
      packed['wpr'], packed['bpr'], packed['lnf'], packed['proj'])
    return out.reshape(N, E)


# --------------------------- pure-JAX reference -----------------------------
def _mm(a, b):
    # bf16 operands, f32 accumulation (same matmul discipline as the kernel)
    return jnp.dot(a.astype(jnp.bfloat16), b.astype(jnp.bfloat16),
                   preferred_element_type=jnp.float32)


def text_encoder_ref(params, prompts, tokenized_prompts):
    N, T, D = prompts.shape
    H, HD = HEADS, D // HEADS
    bf16 = jnp.bfloat16

    x = prompts + params['pos_emb'][None]
    row = lax.broadcasted_iota(jnp.int32, (T, T), 0)
    col = lax.broadcasted_iota(jnp.int32, (T, T), 1)
    causal = jnp.where(col <= row, 0.0, -1e30).astype(jnp.float32)
    scale = 1.0 / (HD ** 0.5)

    def split(a):                      # (N,T,D) -> (N,H,T,HD)
        return a.reshape(N, T, H, HD).transpose(0, 2, 1, 3)

    for lp in params['layers']:
        h = _layer_norm(x, lp['ln1_w'], lp['ln1_b'])
        q = _mm(h, lp['wq']) + lp['bq']
        k = _mm(h, lp['wk']) + lp['bk']
        v = _mm(h, lp['wv']) + lp['bv']
        s = jnp.einsum('nhqd,nhkd->nhqk',
                       (split(q) * scale).astype(bf16), split(k).astype(bf16),
                       preferred_element_type=jnp.float32) + causal
        p = jax.nn.softmax(s, axis=-1)
        o = jnp.einsum('nhqk,nhkd->nhqd', p.astype(bf16), split(v).astype(bf16),
                       preferred_element_type=jnp.float32)
        o = o.transpose(0, 2, 1, 3).reshape(N, T, D)
        x = x + _mm(o, lp['wo']) + lp['bo']
        h2 = _layer_norm(x, lp['ln2_w'], lp['ln2_b'])
        f = _mm(h2, lp['wfc']) + lp['bfc']
        f = f * jax.nn.sigmoid(1.702 * f)
        x = x + _mm(f, lp['wpr']) + lp['bpr']

    xl = _layer_norm(x, params['ln_f_w'], params['ln_f_b'])
    eot = jnp.argmax(tokenized_prompts, axis=-1)
    pooled = xl[jnp.arange(N), eot]                    # exact EOT gather
    return _mm(pooled, params['text_proj'])


# ------------------------------- params -------------------------------------
def init_params(key):
    keys = jax.random.split(key, LAYERS + 2)

    def rnd(k, shape, scale=0.05):
        return (scale * jax.random.normal(k, shape)).astype(jnp.float32)

    params = {'pos_emb': rnd(keys[0], (CTX_LEN, WIDTH), 0.02), 'layers': []}
    for l in range(LAYERS):
        ks = jax.random.split(keys[1 + l], 16)
        params['layers'].append(dict(
            ln1_w=1.0 + rnd(ks[0], (1, WIDTH)), ln1_b=rnd(ks[1], (1, WIDTH)),
            wq=rnd(ks[2], (WIDTH, WIDTH), 0.08),
            wk=rnd(ks[3], (WIDTH, WIDTH), 0.08),
            wv=rnd(ks[4], (WIDTH, WIDTH), 0.08),
            bq=rnd(ks[5], (1, WIDTH)), bk=rnd(ks[6], (1, WIDTH)),
            bv=rnd(ks[7], (1, WIDTH)),
            wo=rnd(ks[8], (WIDTH, WIDTH), 0.08), bo=rnd(ks[9], (1, WIDTH)),
            ln2_w=1.0 + rnd(ks[10], (1, WIDTH)), ln2_b=rnd(ks[11], (1, WIDTH)),
            wfc=rnd(ks[12], (WIDTH, 4 * WIDTH), 0.08),
            bfc=rnd(ks[13], (1, 4 * WIDTH)),
            wpr=rnd(ks[14], (4 * WIDTH, WIDTH), 0.08),
            bpr=rnd(ks[15], (1, WIDTH)),
        ))
    kf = jax.random.split(keys[-1], 3)
    params['ln_f_w'] = 1.0 + rnd(kf[0], (1, WIDTH))
    params['ln_f_b'] = rnd(kf[1], (1, WIDTH))
    params['text_proj'] = rnd(kf[2], (WIDTH, EMBED_DIM), 0.1)
    return params


# --------------------------------- main --------------------------------------
if __name__ == "__main__":
    key = jax.random.PRNGKey(0)
    kp, kt, kw = jax.random.split(key, 3)
    params = init_params(kw)
    packed = pack_params(params)        # pack + bf16 cast + scale fold, once

    # prompts = learned context + class-token embeddings, already in embedding space
    prompts = jax.random.normal(kp, (N_PROMPTS, CTX_LEN, WIDTH), jnp.float32)

    # tokenized_prompts: int token ids; EOT token has the largest id (CLIP convention)
    tokens = jax.random.randint(kt, (N_PROMPTS, CTX_LEN), 1, 100).astype(jnp.int32)
    eot_pos = jnp.array([5, 7, 3, 6], dtype=jnp.int32)
    tokens = tokens.at[jnp.arange(N_PROMPTS), eot_pos].set(1000)

    fwd = jax.jit(text_encoder_pallas, static_argnames=("block_prompts",))
    out = jax.block_until_ready(fwd(packed, prompts, tokens,
                                    block_prompts=PROMPTS_PER_BLOCK))

    ref = text_encoder_ref(params, prompts, tokens)
    assert out.shape == (N_PROMPTS, EMBED_DIM), out.shape
    # Both paths use bf16 matmul operands with f32 accumulation.  Remaining deltas:
    # scale folded into wqkv before the bf16 cast (kernel) vs scale-after-matmul (ref),
    # the approx EUP reciprocal in the kernel softmax, and transcendental impl diffs.
    np.testing.assert_allclose(np.asarray(out), np.asarray(ref), atol=1e-2, rtol=1e-2)
    print("KERNEL_OK")
</pallas_src>

<mosaic_0001>
module attributes {stable_mosaic.version = 11 : i64} {
  func.func @_text_encoder_kernel(%arg0: i32, %arg1: i32, %arg2: memref<4xi32, #tpu.memory_space<smem>>, %arg3: memref<16x32xf32, #tpu.memory_space<vmem>>, %arg4: memref<8x32xf32, #tpu.memory_space<vmem>>, %arg5: memref<1x4x32xf32, #tpu.memory_space<vmem>>, %arg6: memref<1x32x96xbf16, #tpu.memory_space<vmem>>, %arg7: memref<1x1x96xf32, #tpu.memory_space<vmem>>, %arg8: memref<1x32x32xbf16, #tpu.memory_space<vmem>>, %arg9: memref<1x1x32xf32, #tpu.memory_space<vmem>>, %arg10: memref<1x32x128xbf16, #tpu.memory_space<vmem>>, %arg11: memref<1x1x128xf32, #tpu.memory_space<vmem>>, %arg12: memref<1x128x32xbf16, #tpu.memory_space<vmem>>, %arg13: memref<1x1x32xf32, #tpu.memory_space<vmem>>, %arg14: memref<2x32xf32, #tpu.memory_space<vmem>>, %arg15: memref<32x16xbf16, #tpu.memory_space<vmem>>, %arg16: memref<1x2x16xf32, #tpu.memory_space<vmem>>, %arg17: memref<16x32xf32, #tpu.memory_space<vmem>>, %arg18: memref<16x32xf32, #tpu.memory_space<vmem>>) attributes {dimension_semantics = [#tpu.dimension_semantics<parallel>, #tpu.dimension_semantics<arbitrary>], iteration_bounds = array<i64: 2, 2>, scalar_prefetch = 1 : i64, scratch_operands = 2 : i64, tpu.core_type = #tpu.core_type<tc>, window_params = [{transform_indices = @transform_0, window_bounds = array<i64: 16, 32>}, {pipeline_mode = #tpu.pipeline_mode<synchronous>, transform_indices = @transform_1, window_bounds = array<i64: 8, 32>}, {transform_indices = @transform_2, window_bounds = array<i64: 1, 4, 32>}, {transform_indices = @transform_3, window_bounds = array<i64: 1, 32, 96>}, {transform_indices = @transform_4, window_bounds = array<i64: 1, 1, 96>}, {transform_indices = @transform_5, window_bounds = array<i64: 1, 32, 32>}, {transform_indices = @transform_6, window_bounds = array<i64: 1, 1, 32>}, {transform_indices = @transform_7, window_bounds = array<i64: 1, 32, 128>}, {transform_indices = @transform_8, window_bounds = array<i64: 1, 1, 128>}, {transform_indices = @transform_9, window_bounds = array<i64: 1, 128, 32>}, {transform_indices = @transform_10, window_bounds = array<i64: 1, 1, 32>}, {pipeline_mode = #tpu.pipeline_mode<synchronous>, transform_indices = @transform_11, window_bounds = array<i64: 2, 32>}, {pipeline_mode = #tpu.pipeline_mode<synchronous>, transform_indices = @transform_12, window_bounds = array<i64: 32, 16>}, {transform_indices = @transform_13, window_bounds = array<i64: 1, 2, 16>}]} {
    %c0_i32 = arith.constant 0 : i32
    %0 = arith.cmpi eq, %arg1, %c0_i32 : i32
    %1 = arith.extui %0 : i1 to i32
    %c0_i32_0 = arith.constant 0 : i32
    %2 = arith.cmpi ne, %1, %c0_i32_0 : i32
    scf.if %2 {
      %c0_96 = arith.constant 0 : index
      %c0_97 = arith.constant 0 : index
      %275 = vector.load %arg3[%c0_96, %c0_97] : memref<16x32xf32, #tpu.memory_space<vmem>>, vector<8x32xf32>
      %c0_98 = arith.constant 0 : index
      %c0_99 = arith.constant 0 : index
      %276 = vector.load %arg4[%c0_98, %c0_99] : memref<8x32xf32, #tpu.memory_space<vmem>>, vector<8x32xf32>
      %277 = arith.addf %275, %276 : vector<8x32xf32>
      %c0_100 = arith.constant 0 : index
      %c0_101 = arith.constant 0 : index
      %278 = vector.load %arg17[%c0_100, %c0_101] : memref<16x32xf32, #tpu.memory_space<vmem>>, vector<8x32xf32>
      tpu.vector_store %arg17[%c0_100, %c0_101], %277 {strides = array<i32>} : memref<16x32xf32, #tpu.memory_space<vmem>>, vector<8x32xf32>,
      %c8_102 = arith.constant 8 : index
      %c0_103 = arith.constant 0 : index
      %279 = vector.load %arg3[%c8_102, %c0_103] : memref<16x32xf32, #tpu.memory_space<vmem>>, vector<8x32xf32>
      %c0_104 = arith.constant 0 : index
      %c0_105 = arith.constant 0 : index
      %280 = vector.load %arg4[%c0_104, %c0_105] : memref<8x32xf32, #tpu.memory_space<vmem>>, vector<8x32xf32>
      %281 = arith.addf %279, %280 : vector<8x32xf32>
      %c8_106 = arith.constant 8 : index
      %c0_107 = arith.constant 0 : index
      %282 = vector.load %arg17[%c8_106, %c0_107] : memref<16x32xf32, #tpu.memory_space<vmem>>, vector<8x32xf32>
      tpu.vector_store %arg17[%c8_106, %c0_107], %281 {strides = array<i32>} : memref<16x32xf32, #tpu.memory_space<vmem>>, vector<8x32xf32>,
    } else {
    }
    %3 = tpu.iota {dimensions = array<i32: 0>} : vector<8x8xi32>
    %4 = tpu.iota {dimensions = array<i32: 1>} : vector<8x8xi32>
    %5 = arith.cmpi sle, %4, %3 : vector<8x8xi32>
    %cst = arith.constant 0.000000e+00 : f32
    %cst_1 = arith.constant -1.000000e+30 : f32
    %6 = vector.broadcast %cst : f32 to vector<8x8xf32>
    %7 = vector.broadcast %cst_1 : f32 to vector<8x8xf32>
    %8 = arith.select %5, %6, %7 : vector<8x8xi1>, vector<8x8xf32>
    %c0 = arith.constant 0 : index
    %c0_2 = arith.constant 0 : index
    %9 = vector.load %arg17[%c0, %c0_2] : memref<16x32xf32, #tpu.memory_space<vmem>>, vector<16x32xf32>
    %c0_3 = arith.constant 0 : index
    %c0_4 = arith.constant 0 : index
    %c0_5 = arith.constant 0 : index
    %10 = vector.load %arg5[%c0_3, %c0_4, %c0_5] : memref<1x4x32xf32, #tpu.memory_space<vmem>>, vector<1x4x32xf32>
    %11 = vector.shape_cast %10 : vector<1x4x32xf32> to vector<4x32xf32>
    %12 = vector.extract_strided_slice %11 {offsets = [0, 0], sizes = [1, 32], strides = [1, 1]} : vector<4x32xf32> to vector<1x32xf32>
    %13 = vector.extract_strided_slice %11 {offsets = [1, 0], sizes = [1, 32], strides = [1, 1]} : vector<4x32xf32> to vector<1x32xf32>
    %cst_6 = arith.constant dense<0.000000e+00> : vector<16xf32>
    %14 = vector.multi_reduction <add>, %9, %cst_6 [1] : vector<16x32xf32> to vector<16xf32>
    %15 = vector.shape_cast %14 : vector<16xf32> to vector<16x1xf32>
    %cst_7 = arith.constant 3.200000e+01 : f32
    %16 = vector.broadcast %cst_7 : f32 to vector<16x1xf32>
    %17 = arith.divf %15, %16 : vector<16x1xf32>
    %18 = vector.broadcast %17 : vector<16x1xf32> to vector<16x32xf32>
    %19 = arith.subf %9, %18 : vector<16x32xf32>
    %20 = arith.mulf %19, %19 : vector<16x32xf32>
    %cst_8 = arith.constant dense<0.000000e+00> : vector<16xf32>
    %21 = vector.multi_reduction <add>, %20, %cst_8 [1] : vector<16x32xf32> to vector<16xf32>
    %22 = vector.shape_cast %21 : vector<16xf32> to vector<16x1xf32>
    %cst_9 = arith.constant 3.200000e+01 : f32
    %23 = vector.broadcast %cst_9 : f32 to vector<16x1xf32>
    %24 = arith.divf %22, %23 : vector<16x1xf32>
    %25 = vector.broadcast %17 : vector<16x1xf32> to vector<16x32xf32>
    %26 = arith.subf %9, %25 : vector<16x32xf32>
    %cst_10 = arith.constant 9.99999974E-6 : f32
    %27 = vector.broadcast %cst_10 : f32 to vector<16x1xf32>
    %28 = arith.addf %24, %27 : vector<16x1xf32>
    %29 = math.rsqrt %28 : vector<16x1xf32>
    %30 = vector.broadcast %29 : vector<16x1xf32> to vector<16x32xf32>
    %31 = arith.mulf %26, %30 : vector<16x32xf32>
    %32 = vector.broadcast %12 : vector<1x32xf32> to vector<16x32xf32>
    %33 = arith.mulf %31, %32 : vector<16x32xf32>
    %34 = vector.broadcast %13 : vector<1x32xf32> to vector<16x32xf32>
    %35 = arith.addf %33, %34 : vector<16x32xf32>
    %36 = arith.truncf %35 : vector<16x32xf32> to vector<16x32xbf16>
    %c0_11 = arith.constant 0 : index
    %c0_12 = arith.constant 0 : index
    %c0_13 = arith.constant 0 : index
    %37 = vector.load %arg6[%c0_11, %c0_12, %c0_13] : memref<1x32x96xbf16, #tpu.memory_space<vmem>>, vector<1x32x96xbf16>
    %38 = vector.shape_cast %37 : vector<1x32x96xbf16> to vector<32x96xbf16>
    %cst_14 = arith.constant dense<0.000000e+00> : vector<16x96xf32>
    %39 = tpu.matmul %36, %38, %cst_14 {dimension_numbers = #tpu.dot_dimension_numbers<[1], [0], [0], [1], [0, 0, 1, 1], [], []>} : vector<16x32xbf16>, vector<32x96xbf16>, vector<16x96xf32> -> vector<16x96xf32>
    %c0_15 = arith.constant 0 : index
    %c0_16 = arith.constant 0 : index
    %c0_17 = arith.constant 0 : index
    %40 = vector.load %arg7[%c0_15, %c0_16, %c0_17] : memref<1x1x96xf32, #tpu.memory_space<vmem>>, vector<1x1x96xf32>
    %41 = vector.shape_cast %40 : vector<1x1x96xf32> to vector<1x96xf32>
    %42 = vector.broadcast %41 : vector<1x96xf32> to vector<16x96xf32>
    %43 = arith.addf %39, %42 : vector<16x96xf32>
    %44 = vector.extract_strided_slice %43 {offsets = [0, 0], sizes = [8, 8], strides = [1, 1]} : vector<16x96xf32> to vector<8x8xf32>
    %45 = vector.extract_strided_slice %43 {offsets = [0, 32], sizes = [8, 8], strides = [1, 1]} : vector<16x96xf32> to vector<8x8xf32>
    %46 = vector.extract_strided_slice %43 {offsets = [0, 64], sizes = [8, 8], strides = [1, 1]} : vector<16x96xf32> to vector<8x8xf32>
    %47 = arith.truncf %44 : vector<8x8xf32> to vector<8x8xbf16>
    %48 = arith.truncf %45 : vector<8x8xf32> to vector<8x8xbf16>
    %cst_18 = arith.constant dense<0.000000e+00> : vector<8x8xf32>
    %49 = tpu.matmul %47, %48, %cst_18 {dimension_numbers = #tpu.dot_dimension_numbers<[1], [1], [0], [0], [0, 0, 1, 0], [], []>} : vector<8x8xbf16>, vector<8x8xbf16>, vector<8x8xf32> -> vector<8x8xf32>
    %50 = arith.addf %49, %8 : vector<8x8xf32>
    %cst_19 = arith.constant dense<0xFF800000> : vector<8xf32>
    %51 = vector.multi_reduction <maximumf>, %50, %cst_19 [1] : vector<8x8xf32> to vector<8xf32>
    %52 = vector.shape_cast %51 : vector<8xf32> to vector<8x1xf32>
    %53 = vector.broadcast %52 : vector<8x1xf32> to vector<8x8xf32>
    %54 = arith.subf %50, %53 : vector<8x8xf32>
    %55 = math.exp %54 : vector<8x8xf32>
    %cst_20 = arith.constant dense<0.000000e+00> : vector<8xf32>
    %56 = vector.multi_reduction <add>, %55, %cst_20 [1] : vector<8x8xf32> to vector<8xf32>
    %57 = vector.shape_cast %56 : vector<8xf32> to vector<8x1xf32>
    %58 = tpu.reciprocal %57 {approx = true} : vector<8x1xf32> -> vector<8x1xf32>
    %59 = vector.broadcast %58 : vector<8x1xf32> to vector<8x8xf32>
    %60 = arith.mulf %55, %59 : vector<8x8xf32>
    %61 = arith.truncf %60 : vector<8x8xf32> to vector<8x8xbf16>
    %62 = arith.truncf %46 : vector<8x8xf32> to vector<8x8xbf16>
    %cst_21 = arith.constant dense<0.000000e+00> : vector<8x8xf32>
    %63 = tpu.matmul %61, %62, %cst_21 {dimension_numbers = #tpu.dot_dimension_numbers<[1], [0], [0], [1], [0, 0, 1, 1], [], []>} : vector<8x8xbf16>, vector<8x8xbf16>, vector<8x8xf32> -> vector<8x8xf32>
    %c0_22 = arith.constant 0 : index
    %c0_23 = arith.constant 0 : index
    %64 = vector.load %arg18[%c0_22, %c0_23] : memref<16x32xf32, #tpu.memory_space<vmem>>, vector<8x8xf32>
    tpu.vector_store %arg18[%c0_22, %c0_23], %63 {strides = array<i32>} : memref<16x32xf32, #tpu.memory_space<vmem>>, vector<8x8xf32>,
    %65 = vector.extract_strided_slice %43 {offsets = [0, 8], sizes = [8, 8], strides = [1, 1]} : vector<16x96xf32> to vector<8x8xf32>
    %66 = vector.extract_strided_slice %43 {offsets = [0, 40], sizes = [8, 8], strides = [1, 1]} : vector<16x96xf32> to vector<8x8xf32>
    %67 = vector.extract_strided_slice %43 {offsets = [0, 72], sizes = [8, 8], strides = [1, 1]} : vector<16x96xf32> to vector<8x8xf32>
    %68 = arith.truncf %65 : vector<8x8xf32> to vector<8x8xbf16>
    %69 = arith.truncf %66 : vector<8x8xf32> to vector<8x8xbf16>
    %cst_24 = arith.constant dense<0.000000e+00> : vector<8x8xf32>
    %70 = tpu.matmul %68, %69, %cst_24 {dimension_numbers = #tpu.dot_dimension_numbers<[1], [1], [0], [0], [0, 0, 1, 0], [], []>} : vector<8x8xbf16>, vector<8x8xbf16>, vector<8x8xf32> -> vector<8x8xf32>
    %71 = arith.addf %70, %8 : vector<8x8xf32>
    %cst_25 = arith.constant dense<0xFF800000> : vector<8xf32>
    %72 = vector.multi_reduction <maximumf>, %71, %cst_25 [1] : vector<8x8xf32> to vector<8xf32>
    %73 = vector.shape_cast %72 : vector<8xf32> to vector<8x1xf32>
    %74 = vector.broadcast %73 : vector<8x1xf32> to vector<8x8xf32>
    %75 = arith.subf %71, %74 : vector<8x8xf32>
    %76 = math.exp %75 : vector<8x8xf32>
    %cst_26 = arith.constant dense<0.000000e+00> : vector<8xf32>
    %77 = vector.multi_reduction <add>, %76, %cst_26 [1] : vector<8x8xf32> to vector<8xf32>
    %78 = vector.shape_cast %77 : vector<8xf32> to vector<8x1xf32>
    %79 = tpu.reciprocal %78 {approx = true} : vector<8x1xf32> -> vector<8x1xf32>
    %80 = vector.broadcast %79 : vector<8x1xf32> to vector<8x8xf32>
    %81 = arith.mulf %76, %80 : vector<8x8xf32>
    %82 = arith.truncf %81 : vector<8x8xf32> to vector<8x8xbf16>
    %83 = arith.truncf %67 : vector<8x8xf32> to vector<8x8xbf16>
    %cst_27 = arith.constant dense<0.000000e+00> : vector<8x8xf32>
    %84 = tpu.matmul %82, %83, %cst_27 {dimension_numbers = #tpu.dot_dimension_numbers<[1], [0], [0], [1], [0, 0, 1, 1], [], []>} : vector<8x8xbf16>, vector<8x8xbf16>, vector<8x8xf32> -> vector<8x8xf32>
    %c0_28 = arith.constant 0 : index
    %c8 = arith.constant 8 : index
    %85 = vector.load %arg18[%c0_28, %c8] : memref<16x32xf32, #tpu.memory_space<vmem>>, vector<8x8xf32>
    tpu.vector_store %arg18[%c0_28, %c8], %84 {strides = array<i32>} : memref<16x32xf32, #tpu.memory_space<vmem>>, vector<8x8xf32>,
    %86 = vector.extract_strided_slice %43 {offsets = [0, 16], sizes = [8, 8], strides = [1, 1]} : vector<16x96xf32> to vector<8x8xf32>
    %87 = vector.extract_strided_slice %43 {offsets = [0, 48], sizes = [8, 8], strides = [1, 1]} : vector<16x96xf32> to vector<8x8xf32>
    %88 = vector.extract_strided_slice %43 {offsets = [0, 80], sizes = [8, 8], strides = [1, 1]} : vector<16x96xf32> to vector<8x8xf32>
    %89 = arith.truncf %86 : vector<8x8xf32> to vector<8x8xbf16>
    %90 = arith.truncf %87 : vector<8x8xf32> to vector<8x8xbf16>
    %cst_29 = arith.constant dense<0.000000e+00> : vector<8x8xf32>
    %91 = tpu.matmul %89, %90, %cst_29 {dimension_numbers = #tpu.dot_dimension_numbers<[1], [1], [0], [0], [0, 0, 1, 0], [], []>} : vector<8x8xbf16>, vector<8x8xbf16>, vector<8x8xf32> -> vector<8x8xf32>
    %92 = arith.addf %91, %8 : vector<8x8xf32>
    %cst_30 = arith.constant dense<0xFF800000> : vector<8xf32>
    %93 = vector.multi_reduction <maximumf>, %92, %cst_30 [1] : vector<8x8xf32> to vector<8xf32>
    %94 = vector.shape_cast %93 : vector<8xf32> to vector<8x1xf32>
    %95 = vector.broadcast %94 : vector<8x1xf32> to vector<8x8xf32>
    %96 = arith.subf %92, %95 : vector<8x8xf32>
    %97 = math.exp %96 : vector<8x8xf32>
    %cst_31 = arith.constant dense<0.000000e+00> : vector<8xf32>
    %98 = vector.multi_reduction <add>, %97, %cst_31 [1] : vector<8x8xf32> to vector<8xf32>
    %99 = vector.shape_cast %98 : vector<8xf32> to vector<8x1xf32>
    %100 = tpu.reciprocal %99 {approx = true} : vector<8x1xf32> -> vector<8x1xf32>
    %101 = vector.broadcast %100 : vector<8x1xf32> to vector<8x8xf32>
    %102 = arith.mulf %97, %101 : vector<8x8xf32>
    %103 = arith.truncf %102 : vector<8x8xf32> to vector<8x8xbf16>
    %104 = arith.truncf %88 : vector<8x8xf32> to vector<8x8xbf16>
    %cst_32 = arith.constant dense<0.000000e+00> : vector<8x8xf32>
    %105 = tpu.matmul %103, %104, %cst_32 {dimension_numbers = #tpu.dot_dimension_numbers<[1], [0], [0], [1], [0, 0, 1, 1], [], []>} : vector<8x8xbf16>, vector<8x8xbf16>, vector<8x8xf32> -> vector<8x8xf32>
    %c0_33 = arith.constant 0 : index
    %c16 = arith.constant 16 : index
    %106 = vector.load %arg18[%c0_33, %c16] : memref<16x32xf32, #tpu.memory_space<vmem>>, vector<8x8xf32>
    tpu.vector_store %arg18[%c0_33, %c16], %105 {strides = array<i32>} : memref<16x32xf32, #tpu.memory_space<vmem>>, vector<8x8xf32>,
    %107 = vector.extract_strided_slice %43 {offsets = [0, 24], sizes = [8, 8], strides = [1, 1]} : vector<16x96xf32> to vector<8x8xf32>
    %108 = vector.extract_strided_slice %43 {offsets = [0, 56], sizes = [8, 8], strides = [1, 1]} : vector<16x96xf32> to vector<8x8xf32>
    %109 = vector.extract_strided_slice %43 {offsets = [0, 88], sizes = [8, 8], strides = [1, 1]} : vector<16x96xf32> to vector<8x8xf32>
    %110 = arith.truncf %107 : vector<8x8xf32> to vector<8x8xbf16>
    %111 = arith.truncf %108 : vector<8x8xf32> to vector<8x8xbf16>
    %cst_34 = arith.constant dense<0.000000e+00> : vector<8x8xf32>
    %112 = tpu.matmul %110, %111, %cst_34 {dimension_numbers = #tpu.dot_dimension_numbers<[1], [1], [0], [0], [0, 0, 1, 0], [], []>} : vector<8x8xbf16>, vector<8x8xbf16>, vector<8x8xf32> -> vector<8x8xf32>
    %113 = arith.addf %112, %8 : vector<8x8xf32>
    %cst_35 = arith.constant dense<0xFF800000> : vector<8xf32>
    %114 = vector.multi_reduction <maximumf>, %113, %cst_35 [1] : vector<8x8xf32> to vector<8xf32>
    %115 = vector.shape_cast %114 : vector<8xf32> to vector<8x1xf32>
    %116 = vector.broadcast %115 : vector<8x1xf32> to vector<8x8xf32>
    %117 = arith.subf %113, %116 : vector<8x8xf32>
    %118 = math.exp %117 : vector<8x8xf32>
    %cst_36 = arith.constant dense<0.000000e+00> : vector<8xf32>
    %119 = vector.multi_reduction <add>, %118, %cst_36 [1] : vector<8x8xf32> to vector<8xf32>
    %120 = vector.shape_cast %119 : vector<8xf32> to vector<8x1xf32>
    %121 = tpu.reciprocal %120 {approx = true} : vector<8x1xf32> -> vector<8x1xf32>
    %122 = vector.broadcast %121 : vector<8x1xf32> to vector<8x8xf32>
    %123 = arith.mulf %118, %122 : vector<8x8xf32>
    %124 = arith.truncf %123 : vector<8x8xf32> to vector<8x8xbf16>
    %125 = arith.truncf %109 : vector<8x8xf32> to vector<8x8xbf16>
    %cst_37 = arith.constant dense<0.000000e+00> : vector<8x8xf32>
    %126 = tpu.matmul %124, %125, %cst_37 {dimension_numbers = #tpu.dot_dimension_numbers<[1], [0], [0], [1], [0, 0, 1, 1], [], []>} : vector<8x8xbf16>, vector<8x8xbf16>, vector<8x8xf32> -> vector<8x8xf32>
    %c0_38 = arith.constant 0 : index
    %c24 = arith.constant 24 : index
    %127 = vector.load %arg18[%c0_38, %c24] : memref<16x32xf32, #tpu.memory_space<vmem>>, vector<8x8xf32>
    tpu.vector_store %arg18[%c0_38, %c24], %126 {strides = array<i32>} : memref<16x32xf32, #tpu.memory_space<vmem>>, vector<8x8xf32>,
    %128 = vector.extract_strided_slice %43 {offsets = [8, 0], sizes = [8, 8], strides = [1, 1]} : vector<16x96xf32> to vector<8x8xf32>
    %129 = vector.extract_strided_slice %43 {offsets = [8, 32], sizes = [8, 8], strides = [1, 1]} : vector<16x96xf32> to vector<8x8xf32>
    %130 = vector.extract_strided_slice %43 {offsets = [8, 64], sizes = [8, 8], strides = [1, 1]} : vector<16x96xf32> to vector<8x8xf32>
    %131 = arith.truncf %128 : vector<8x8xf32> to vector<8x8xbf16>
    %132 = arith.truncf %129 : vector<8x8xf32> to vector<8x8xbf16>
    %cst_39 = arith.constant dense<0.000000e+00> : vector<8x8xf32>
    %133 = tpu.matmul %131, %132, %cst_39 {dimension_numbers = #tpu.dot_dimension_numbers<[1], [1], [0], [0], [0, 0, 1, 0], [], []>} : vector<8x8xbf16>, vector<8x8xbf16>, vector<8x8xf32> -> vector<8x8xf32>
    %134 = arith.addf %133, %8 : vector<8x8xf32>
    %cst_40 = arith.constant dense<0xFF800000> : vector<8xf32>
    %135 = vector.multi_reduction <maximumf>, %134, %cst_40 [1] : vector<8x8xf32> to vector<8xf32>
    %136 = vector.shape_cast %135 : vector<8xf32> to vector<8x1xf32>
    %137 = vector.broadcast %136 : vector<8x1xf32> to vector<8x8xf32>
    %138 = arith.subf %134, %137 : vector<8x8xf32>
    %139 = math.exp %138 : vector<8x8xf32>
    %cst_41 = arith.constant dense<0.000000e+00> : vector<8xf32>
    %140 = vector.multi_reduction <add>, %139, %cst_41 [1] : vector<8x8xf32> to vector<8xf32>
    %141 = vector.shape_cast %140 : vector<8xf32> to vector<8x1xf32>
    %142 = tpu.reciprocal %141 {approx = true} : vector<8x1xf32> -> vector<8x1xf32>
    %143 = vector.broadcast %142 : vector<8x1xf32> to vector<8x8xf32>
    %144 = arith.mulf %139, %143 : vector<8x8xf32>
    %145 = arith.truncf %144 : vector<8x8xf32> to vector<8x8xbf16>
    %146 = arith.truncf %130 : vector<8x8xf32> to vector<8x8xbf16>
    %cst_42 = arith.constant dense<0.000000e+00> : vector<8x8xf32>
    %147 = tpu.matmul %145, %146, %cst_42 {dimension_numbers = #tpu.dot_dimension_numbers<[1], [0], [0], [1], [0, 0, 1, 1], [], []>} : vector<8x8xbf16>, vector<8x8xbf16>, vector<8x8xf32> -> vector<8x8xf32>
    %c8_43 = arith.constant 8 : index
    %c0_44 = arith.constant 0 : index
    %148 = vector.load %arg18[%c8_43, %c0_44] : memref<16x32xf32, #tpu.memory_space<vmem>>, vector<8x8xf32>
    tpu.vector_store %arg18[%c8_43, %c0_44], %147 {strides = array<i32>} : memref<16x32xf32, #tpu.memory_space<vmem>>, vector<8x8xf32>,
    %149 = vector.extract_strided_slice %43 {offsets = [8, 8], sizes = [8, 8], strides = [1, 1]} : vector<16x96xf32> to vector<8x8xf32>
    %150 = vector.extract_strided_slice %43 {offsets = [8, 40], sizes = [8, 8], strides = [1, 1]} : vector<16x96xf32> to vector<8x8xf32>
    %151 = vector.extract_strided_slice %43 {offsets = [8, 72], sizes = [8, 8], strides = [1, 1]} : vector<16x96xf32> to vector<8x8xf32>
    %152 = arith.truncf %149 : vector<8x8xf32> to vector<8x8xbf16>
    %153 = arith.truncf %150 : vector<8x8xf32> to vector<8x8xbf16>
    %cst_45 = arith.constant dense<0.000000e+00> : vector<8x8xf32>
    %154 = tpu.matmul %152, %153, %cst_45 {dimension_numbers = #tpu.dot_dimension_numbers<[1], [1], [0], [0], [0, 0, 1, 0], [], []>} : vector<8x8xbf16>, vector<8x8xbf16>, vector<8x8xf32> -> vector<8x8xf32>
    %155 = arith.addf %154, %8 : vector<8x8xf32>
    %cst_46 = arith.constant dense<0xFF800000> : vector<8xf32>
    %156 = vector.multi_reduction <maximumf>, %155, %cst_46 [1] : vector<8x8xf32> to vector<8xf32>
    %157 = vector.shape_cast %156 : vector<8xf32> to vector<8x1xf32>
    %158 = vector.broadcast %157 : vector<8x1xf32> to vector<8x8xf32>
    %159 = arith.subf %155, %158 : vector<8x8xf32>
    %160 = math.exp %159 : vector<8x8xf32>
    %cst_47 = arith.constant dense<0.000000e+00> : vector<8xf32>
    %161 = vector.multi_reduction <add>, %160, %cst_47 [1] : vector<8x8xf32> to vector<8xf32>
    %162 = vector.shape_cast %161 : vector<8xf32> to vector<8x1xf32>
    %163 = tpu.reciprocal %162 {approx = true} : vector<8x1xf32> -> vector<8x1xf32>
    %164 = vector.broadcast %163 : vector<8x1xf32> to vector<8x8xf32>
    %165 = arith.mulf %160, %164 : vector<8x8xf32>
    %166 = arith.truncf %165 : vector<8x8xf32> to vector<8x8xbf16>
    %167 = arith.truncf %151 : vector<8x8xf32> to vector<8x8xbf16>
    %cst_48 = arith.constant dense<0.000000e+00> : vector<8x8xf32>
    %168 = tpu.matmul %166, %167, %cst_48 {dimension_numbers = #tpu.dot_dimension_numbers<[1], [0], [0], [1], [0, 0, 1, 1], [], []>} : vector<8x8xbf16>, vector<8x8xbf16>, vector<8x8xf32> -> vector<8x8xf32>
    %c8_49 = arith.constant 8 : index
    %c8_50 = arith.constant 8 : index
    %169 = vector.load %arg18[%c8_49, %c8_50] : memref<16x32xf32, #tpu.memory_space<vmem>>, vector<8x8xf32>
    tpu.vector_store %arg18[%c8_49, %c8_50], %168 {strides = array<i32>} : memref<16x32xf32, #tpu.memory_space<vmem>>, vector<8x8xf32>,
    %170 = vector.extract_strided_slice %43 {offsets = [8, 16], sizes = [8, 8], strides = [1, 1]} : vector<16x96xf32> to vector<8x8xf32>
    %171 = vector.extract_strided_slice %43 {offsets = [8, 48], sizes = [8, 8], strides = [1, 1]} : vector<16x96xf32> to vector<8x8xf32>
    %172 = vector.extract_strided_slice %43 {offsets = [8, 80], sizes = [8, 8], strides = [1, 1]} : vector<16x96xf32> to vector<8x8xf32>
    %173 = arith.truncf %170 : vector<8x8xf32> to vector<8x8xbf16>
    %174 = arith.truncf %171 : vector<8x8xf32> to vector<8x8xbf16>
    %cst_51 = arith.constant dense<0.000000e+00> : vector<8x8xf32>
    %175 = tpu.matmul %173, %174, %cst_51 {dimension_numbers = #tpu.dot_dimension_numbers<[1], [1], [0], [0], [0, 0, 1, 0], [], []>} : vector<8x8xbf16>, vector<8x8xbf16>, vector<8x8xf32> -> vector<8x8xf32>
    %176 = arith.addf %175, %8 : vector<8x8xf32>
    %cst_52 = arith.constant dense<0xFF800000> : vector<8xf32>
    %177 = vector.multi_reduction <maximumf>, %176, %cst_52 [1] : vector<8x8xf32> to vector<8xf32>
    %178 = vector.shape_cast %177 : vector<8xf32> to vector<8x1xf32>
    %179 = vector.broadcast %178 : vector<8x1xf32> to vector<8x8xf32>
    %180 = arith.subf %176, %179 : vector<8x8xf32>
    %181 = math.exp %180 : vector<8x8xf32>
    %cst_53 = arith.constant dense<0.000000e+00> : vector<8xf32>
    %182 = vector.multi_reduction <add>, %181, %cst_53 [1] : vector<8x8xf32> to vector<8xf32>
    %183 = vector.shape_cast %182 : vector<8xf32> to vector<8x1xf32>
    %184 = tpu.reciprocal %183 {approx = true} : vector<8x1xf32> -> vector<8x1xf32>
    %185 = vector.broadcast %184 : vector<8x1xf32> to vector<8x8xf32>
    %186 = arith.mulf %181, %185 : vector<8x8xf32>
    %187 = arith.truncf %186 : vector<8x8xf32> to vector<8x8xbf16>
    %188 = arith.truncf %172 : vector<8x8xf32> to vector<8x8xbf16>
    %cst_54 = arith.constant dense<0.000000e+00> : vector<8x8xf32>
    %189 = tpu.matmul %187, %188, %cst_54 {dimension_numbers = #tpu.dot_dimension_numbers<[1], [0], [0], [1], [0, 0, 1, 1], [], []>} : vector<8x8xbf16>, vector<8x8xbf16>, vector<8x8xf32> -> vector<8x8xf32>
    %c8_55 = arith.constant 8 : index
    %c16_56 = arith.constant 16 : index
    %190 = vector.load %arg18[%c8_55, %c16_56] : memref<16x32xf32, #tpu.memory_space<vmem>>, vector<8x8xf32>
    tpu.vector_store %arg18[%c8_55, %c16_56], %189 {strides = array<i32>} : memref<16x32xf32, #tpu.memory_space<vmem>>, vector<8x8xf32>,
    %191 = vector.extract_strided_slice %43 {offsets = [8, 24], sizes = [8, 8], strides = [1, 1]} : vector<16x96xf32> to vector<8x8xf32>
    %192 = vector.extract_strided_slice %43 {offsets = [8, 56], sizes = [8, 8], strides = [1, 1]} : vector<16x96xf32> to vector<8x8xf32>
    %193 = vector.extract_strided_slice %43 {offsets = [8, 88], sizes = [8, 8], strides = [1, 1]} : vector<16x96xf32> to vector<8x8xf32>
    %194 = arith.truncf %191 : vector<8x8xf32> to vector<8x8xbf16>
    %195 = arith.truncf %192 : vector<8x8xf32> to vector<8x8xbf16>
    %cst_57 = arith.constant dense<0.000000e+00> : vector<8x8xf32>
    %196 = tpu.matmul %194, %195, %cst_57 {dimension_numbers = #tpu.dot_dimension_numbers<[1], [1], [0], [0], [0, 0, 1, 0], [], []>} : vector<8x8xbf16>, vector<8x8xbf16>, vector<8x8xf32> -> vector<8x8xf32>
    %197 = arith.addf %196, %8 : vector<8x8xf32>
    %cst_58 = arith.constant dense<0xFF800000> : vector<8xf32>
    %198 = vector.multi_reduction <maximumf>, %197, %cst_58 [1] : vector<8x8xf32> to vector<8xf32>
    %199 = vector.shape_cast %198 : vector<8xf32> to vector<8x1xf32>
    %200 = vector.broadcast %199 : vector<8x1xf32> to vector<8x8xf32>
    %201 = arith.subf %197, %200 : vector<8x8xf32>
    %202 = math.exp %201 : vector<8x8xf32>
    %cst_59 = arith.constant dense<0.000000e+00> : vector<8xf32>
    %203 = vector.multi_reduction <add>, %202, %cst_59 [1] : vector<8x8xf32> to vector<8xf32>
    %204 = vector.shape_cast %203 : vector<8xf32> to vector<8x1xf32>
    %205 = tpu.reciprocal %204 {approx = true} : vector<8x1xf32> -> vector<8x1xf32>
    %206 = vector.broadcast %205 : vector<8x1xf32> to vector<8x8xf32>
    %207 = arith.mulf %202, %206 : vector<8x8xf32>
    %208 = arith.truncf %207 : vector<8x8xf32> to vector<8x8xbf16>
    %209 = arith.truncf %193 : vector<8x8xf32> to vector<8x8xbf16>
    %cst_60 = arith.constant dense<0.000000e+00> : vector<8x8xf32>
    %210 = tpu.matmul %208, %209, %cst_60 {dimension_numbers = #tpu.dot_dimension_numbers<[1], [0], [0], [1], [0, 0, 1, 1], [], []>} : vector<8x8xbf16>, vector<8x8xbf16>, vector<8x8xf32> -> vector<8x8xf32>
    %c8_61 = arith.constant 8 : index
    %c24_62 = arith.constant 24 : index
    %211 = vector.load %arg18[%c8_61, %c24_62] : memref<16x32xf32, #tpu.memory_space<vmem>>, vector<8x8xf32>
    tpu.vector_store %arg18[%c8_61, %c24_62], %210 {strides = array<i32>} : memref<16x32xf32, #tpu.memory_space<vmem>>, vector<8x8xf32>,
    %c0_63 = arith.constant 0 : index
    %c0_64 = arith.constant 0 : index
    %212 = vector.load %arg18[%c0_63, %c0_64] : memref<16x32xf32, #tpu.memory_space<vmem>>, vector<16x32xf32>
    %213 = arith.truncf %212 : vector<16x32xf32> to vector<16x32xbf16>
    %c0_65 = arith.constant 0 : index
    %c0_66 = arith.constant 0 : index
    %c0_67 = arith.constant 0 : index
    %214 = vector.load %arg8[%c0_65, %c0_66, %c0_67] : memref<1x32x32xbf16, #tpu.memory_space<vmem>>, vector<1x32x32xbf16>
    %215 = vector.shape_cast %214 : vector<1x32x32xbf16> to vector<32x32xbf16>
    %cst_68 = arith.constant dense<0.000000e+00> : vector<16x32xf32>
    %216 = tpu.matmul %213, %215, %cst_68 {dimension_numbers = #tpu.dot_dimension_numbers<[1], [0], [0], [1], [0, 0, 1, 1], [], []>} : vector<16x32xbf16>, vector<32x32xbf16>, vector<16x32xf32> -> vector<16x32xf32>
    %217 = arith.addf %9, %216 : vector<16x32xf32>
    %c0_69 = arith.constant 0 : index
    %c0_70 = arith.constant 0 : index
    %c0_71 = arith.constant 0 : index
    %218 = vector.load %arg9[%c0_69, %c0_70, %c0_71] : memref<1x1x32xf32, #tpu.memory_space<vmem>>, vector<1x1x32xf32>
    %219 = vector.shape_cast %218 : vector<1x1x32xf32> to vector<1x32xf32>
    %220 = vector.broadcast %219 : vector<1x32xf32> to vector<16x32xf32>
    %221 = arith.addf %217, %220 : vector<16x32xf32>
    %222 = vector.extract_strided_slice %11 {offsets = [2, 0], sizes = [1, 32], strides = [1, 1]} : vector<4x32xf32> to vector<1x32xf32>
    %223 = vector.extract_strided_slice %11 {offsets = [3, 0], sizes = [1, 32], strides = [1, 1]} : vector<4x32xf32> to vector<1x32xf32>
    %cst_72 = arith.constant dense<0.000000e+00> : vector<16xf32>
    %224 = vector.multi_reduction <add>, %221, %cst_72 [1] : vector<16x32xf32> to vector<16xf32>
    %225 = vector.shape_cast %224 : vector<16xf32> to vector<16x1xf32>
    %cst_73 = arith.constant 3.200000e+01 : f32
    %226 = vector.broadcast %cst_73 : f32 to vector<16x1xf32>
    %227 = arith.divf %225, %226 : vector<16x1xf32>
    %228 = vector.broadcast %227 : vector<16x1xf32> to vector<16x32xf32>
    %229 = arith.subf %221, %228 : vector<16x32xf32>
    %230 = arith.mulf %229, %229 : vector<16x32xf32>
    %cst_74 = arith.constant dense<0.000000e+00> : vector<16xf32>
    %231 = vector.multi_reduction <add>, %230, %cst_74 [1] : vector<16x32xf32> to vector<16xf32>
    %232 = vector.shape_cast %231 : vector<16xf32> to vector<16x1xf32>
    %cst_75 = arith.constant 3.200000e+01 : f32
    %233 = vector.broadcast %cst_75 : f32 to vector<16x1xf32>
    %234 = arith.divf %232, %233 : vector<16x1xf32>
    %235 = vector.broadcast %227 : vector<16x1xf32> to vector<16x32xf32>
    %236 = arith.subf %221, %235 : vector<16x32xf32>
    %cst_76 = arith.constant 9.99999974E-6 : f32
    %237 = vector.broadcast %cst_76 : f32 to vector<16x1xf32>
    %238 = arith.addf %234, %237 : vector<16x1xf32>
    %239 = math.rsqrt %238 : vector<16x1xf32>
    %240 = vector.broadcast %239 : vector<16x1xf32> to vector<16x32xf32>
    %241 = arith.mulf %236, %240 : vector<16x32xf32>
    %242 = vector.broadcast %222 : vector<1x32xf32> to vector<16x32xf32>
    %243 = arith.mulf %241, %242 : vector<16x32xf32>
    %244 = vector.broadcast %223 : vector<1x32xf32> to vector<16x32xf32>
    %245 = arith.addf %243, %244 : vector<16x32xf32>
    %246 = arith.truncf %245 : vector<16x32xf32> to vector<16x32xbf16>
    %c0_77 = arith.constant 0 : index
    %c0_78 = arith.constant 0 : index
    %c0_79 = arith.constant 0 : index
    %247 = vector.load %arg10[%c0_77, %c0_78, %c0_79] : memref<1x32x128xbf16, #tpu.memory_space<vmem>>, vector<1x32x128xbf16>
    %248 = vector.shape_cast %247 : vector<1x32x128xbf16> to vector<32x128xbf16>
    %cst_80 = arith.constant dense<0.000000e+00> : vector<16x128xf32>
    %249 = tpu.matmul %246, %248, %cst_80 {dimension_numbers = #tpu.dot_dimension_numbers<[1], [0], [0], [1], [0, 0, 1, 1], [], []>} : vector<16x32xbf16>, vector<32x128xbf16>, vector<16x128xf32> -> vector<16x128xf32>
    %c0_81 = arith.constant 0 : index
    %c0_82 = arith.constant 0 : index
    %c0_83 = arith.constant 0 : index
    %250 = vector.load %arg11[%c0_81, %c0_82, %c0_83] : memref<1x1x128xf32, #tpu.memory_space<vmem>>, vector<1x1x128xf32>
    %251 = vector.shape_cast %250 : vector<1x1x128xf32> to vector<1x128xf32>
    %252 = vector.broadcast %251 : vector<1x128xf32> to vector<16x128xf32>
    %253 = arith.addf %249, %252 : vector<16x128xf32>
    %cst_84 = arith.constant 1.702000e+00 : f32
    %254 = vector.broadcast %cst_84 : f32 to vector<16x128xf32>
    %255 = arith.mulf %254, %253 : vector<16x128xf32>
    %256 = arith.negf %255 : vector<16x128xf32>
    %257 = math.exp %256 : vector<16x128xf32>
    %cst_85 = arith.constant 1.000000e+00 : f32
    %258 = vector.broadcast %cst_85 : f32 to vector<16x128xf32>
    %259 = arith.addf %258, %257 : vector<16x128xf32>
    %260 = arith.divf %258, %259 : vector<16x128xf32>
    %261 = arith.mulf %253, %260 : vector<16x128xf32>
    %262 = arith.truncf %261 : vector<16x128xf32> to vector<16x128xbf16>
    %c0_86 = arith.constant 0 : index
    %c0_87 = arith.constant 0 : index
    %c0_88 = arith.constant 0 : index
    %263 = vector.load %arg12[%c0_86, %c0_87, %c0_88] : memref<1x128x32xbf16, #tpu.memory_space<vmem>>, vector<1x128x32xbf16>
    %264 = vector.shape_cast %263 : vector<1x128x32xbf16> to vector<128x32xbf16>
    %cst_89 = arith.constant dense<0.000000e+00> : vector<16x32xf32>
    %265 = tpu.matmul %262, %264, %cst_89 {dimension_numbers = #tpu.dot_dimension_numbers<[1], [0], [0], [1], [0, 0, 1, 1], [], []>} : vector<16x128xbf16>, vector<128x32xbf16>, vector<16x32xf32> -> vector<16x32xf32>
    %266 = arith.addf %221, %265 : vector<16x32xf32>
    %c0_90 = arith.constant 0 : index
    %c0_91 = arith.constant 0 : index
    %c0_92 = arith.constant 0 : index
    %267 = vector.load %arg13[%c0_90, %c0_91, %c0_92] : memref<1x1x32xf32, #tpu.memory_space<vmem>>, vector<1x1x32xf32>
    %268 = vector.shape_cast %267 : vector<1x1x32xf32> to vector<1x32xf32>
    %269 = vector.broadcast %268 : vector<1x32xf32> to vector<16x32xf32>
    %270 = arith.addf %266, %269 : vector<16x32xf32>
    %c0_93 = arith.constant 0 : index
    %c0_94 = arith.constant 0 : index
    %271 = vector.load %arg17[%c0_93, %c0_94] : memref<16x32xf32, #tpu.memory_space<vmem>>, vector<16x32xf32>
    tpu.vector_store %arg17[%c0_93, %c0_94], %270 {strides = array<i32>} : memref<16x32xf32, #tpu.memory_space<vmem>>, vector<16x32xf32>,
    %c1_i32 = arith.constant 1 : i32
    %272 = arith.cmpi eq, %arg1, %c1_i32 : i32
    %273 = arith.extui %272 : i1 to i32
    %c0_i32_95 = arith.constant 0 : i32
    %274 = arith.cmpi ne, %273, %c0_i32_95 : i32
    scf.if %274 {
      %c0_96 = arith.constant 0 : index
      %c0_97 = arith.constant 0 : index
      %275 = vector.load %arg14[%c0_96, %c0_97] : memref<2x32xf32, #tpu.memory_space<vmem>>, vector<2x32xf32>
      %c2_i32 = arith.constant 2 : i32
      %276 = arith.muli %arg0, %c2_i32 : i32
      %c0_i32_98 = arith.constant 0 : i32
      %277 = arith.addi %276, %c0_i32_98 : i32
      %278 = arith.index_cast %277 : i32 to index
      %279 = memref.load %arg2[%278] : memref<4xi32, #tpu.memory_space<smem>>
      %c0_i32_99 = arith.constant 0 : i32
      %280 = arith.addi %c0_i32_99, %279 : i32
      %281 = arith.index_cast %280 : i32 to index
      %c0_100 = arith.constant 0 : index
      %282 = vector.load %arg17[%281, %c0_100] : memref<16x32xf32, #tpu.memory_space<vmem>>, vector<1x32xf32>
      %c0_101 = arith.constant 0 : index
      %c0_102 = arith.constant 0 : index
      %283 = vector.load %arg18[%c0_101, %c0_102] : memref<16x32xf32, #tpu.memory_space<vmem>>, vector<1x32xf32>
      tpu.vector_store %arg18[%c0_101, %c0_102], %282 {strides = array<i32>} : memref<16x32xf32, #tpu.memory_space<vmem>>, vector<1x32xf32>,
      %c2_i32_103 = arith.constant 2 : i32
      %284 = arith.muli %arg0, %c2_i32_103 : i32
      %c1_i32_104 = arith.constant 1 : i32
      %285 = arith.addi %284, %c1_i32_104 : i32
      %286 = arith.index_cast %285 : i32 to index
      %287 = memref.load %arg2[%286] : memref<4xi32, #tpu.memory_space<smem>>
      %c8_i32 = arith.constant 8 : i32
      %288 = arith.addi %c8_i32, %287 : i32
      %289 = arith.index_cast %288 : i32 to index
      %c0_105 = arith.constant 0 : index
      %290 = vector.load %arg17[%289, %c0_105] : memref<16x32xf32, #tpu.memory_space<vmem>>, vector<1x32xf32>
      %c1 = arith.constant 1 : index
      %c0_106 = arith.constant 0 : index
      %291 = vector.load %arg18[%c1, %c0_106] : memref<16x32xf32, #tpu.memory_space<vmem>>, vector<1x32xf32>
      tpu.vector_store %arg18[%c1, %c0_106], %290 {strides = array<i32>} : memref<16x32xf32, #tpu.memory_space<vmem>>, vector<1x32xf32>,
      %c0_107 = arith.constant 0 : index
      %c0_108 = arith.constant 0 : index
      %292 = vector.load %arg18[%c0_107, %c0_108] : memref<16x32xf32, #tpu.memory_space<vmem>>, vector<2x32xf32>
      %293 = vector.extract_strided_slice %275 {offsets = [0, 0], sizes = [1, 32], strides = [1, 1]} : vector<2x32xf32> to vector<1x32xf32>
      %294 = vector.extract_strided_slice %275 {offsets = [1, 0], sizes = [1, 32], strides = [1, 1]} : vector<2x32xf32> to vector<1x32xf32>
      %cst_109 = arith.constant dense<0.000000e+00> : vector<2xf32>
      %295 = vector.multi_reduction <add>, %292, %cst_109 [1] : vector<2x32xf32> to vector<2xf32>
      %296 = vector.shape_cast %295 : vector<2xf32> to vector<2x1xf32>
      %cst_110 = arith.constant 3.200000e+01 : f32
      %297 = vector.broadcast %cst_110 : f32 to vector<2x1xf32>
      %298 = arith.divf %296, %297 : vector<2x1xf32>
      %299 = vector.broadcast %298 : vector<2x1xf32> to vector<2x32xf32>
      %300 = arith.subf %292, %299 : vector<2x32xf32>
      %301 = arith.mulf %300, %300 : vector<2x32xf32>
      %cst_111 = arith.constant dense<0.000000e+00> : vector<2xf32>
      %302 = vector.multi_reduction <add>, %301, %cst_111 [1] : vector<2x32xf32> to vector<2xf32>
      %303 = vector.shape_cast %302 : vector<2xf32> to vector<2x1xf32>
      %cst_112 = arith.constant 3.200000e+01 : f32
      %304 = vector.broadcast %cst_112 : f32 to vector<2x1xf32>
      %305 = arith.divf %303, %304 : vector<2x1xf32>
      %306 = vector.broadcast %298 : vector<2x1xf32> to vector<2x32xf32>
      %307 = arith.subf %292, %306 : vector<2x32xf32>
      %cst_113 = arith.constant 9.99999974E-6 : f32
      %308 = vector.broadcast %cst_113 : f32 to vector<2x1xf32>
      %309 = arith.addf %305, %308 : vector<2x1xf32>
      %310 = math.rsqrt %309 : vector<2x1xf32>
      %311 = vector.broadcast %310 : vector<2x1xf32> to vector<2x32xf32>
      %312 = arith.mulf %307, %311 : vector<2x32xf32>
      %313 = vector.broadcast %293 : vector<1x32xf32> to vector<2x32xf32>
      %314 = arith.mulf %312, %313 : vector<2x32xf32>
      %315 = vector.broadcast %294 : vector<1x32xf32> to vector<2x32xf32>
      %316 = arith.addf %314, %315 : vector<2x32xf32>
      %317 = arith.truncf %316 : vector<2x32xf32> to vector<2x32xbf16>
      %c0_114 = arith.constant 0 : index
      %c0_115 = arith.constant 0 : index
      %318 = vector.load %arg15[%c0_114, %c0_115] : memref<32x16xbf16, #tpu.memory_space<vmem>>, vector<32x16xbf16>
      %cst_116 = arith.constant dense<0.000000e+00> : vector<2x16xf32>
      %319 = tpu.matmul %317, %318, %cst_116 {dimension_numbers = #tpu.dot_dimension_numbers<[1], [0], [0], [1], [0, 0, 1, 1], [], []>} : vector<2x32xbf16>, vector<32x16xbf16>, vector<2x16xf32> -> vector<2x16xf32>
      %c0_117 = arith.constant 0 : index
      %c0_118 = arith.constant 0 : index
      %c0_119 = arith.constant 0 : index
      %320 = vector.load %arg16[%c0_117, %c0_118, %c0_119] : memref<1x2x16xf32, #tpu.memory_space<vmem>>, vector<1x2x16xf32>
      %321 = vector.shape_cast %320 : vector<1x2x16xf32> to vector<2x16xf32>
      %322 = vector.shape_cast %319 : vector<2x16xf32> to vector<1x2x16xf32>
      tpu.vector_store %arg16[%c0_117, %c0_118, %c0_119], %322 {strides = array<i32>} : memref<1x2x16xf32, #tpu.memory_space<vmem>>, vector<1x2x16xf32>,
    } else {
    }
    return
  }
  func.func @transform_0(%arg0: i32, %arg1: i32, %arg2: memref<4xi32, #tpu.memory_space<smem>>) -> (i32, i32) {
    %c0_i32 = arith.constant 0 : i32
    %c0_i32_0 = arith.constant 0 : i32
    return %arg0, %c0_i32 : i32, i32
  }
  func.func @transform_1(%arg0: i32, %arg1: i32, %arg2: memref<4xi32, #tpu.memory_space<smem>>) -> (i32, i32) {
    %c0_i32 = arith.constant 0 : i32
    %c0_i32_0 = arith.constant 0 : i32
    %c0_i32_1 = arith.constant 0 : i32
    return %c0_i32, %c0_i32_0 : i32, i32
  }
  func.func @transform_2(%arg0: i32, %arg1: i32, %arg2: memref<4xi32, #tpu.memory_space<smem>>) -> (i32, i32, i32) {
    %c0_i32 = arith.constant 0 : i32
    %c0_i32_0 = arith.constant 0 : i32
    %c0_i32_1 = arith.constant 0 : i32
    return %arg1, %c0_i32, %c0_i32_0 : i32, i32, i32
  }
  func.func @transform_3(%arg0: i32, %arg1: i32, %arg2: memref<4xi32, #tpu.memory_space<smem>>) -> (i32, i32, i32) {
    %c0_i32 = arith.constant 0 : i32
    %c0_i32_0 = arith.constant 0 : i32
    %c0_i32_1 = arith.constant 0 : i32
    return %arg1, %c0_i32, %c0_i32_0 : i32, i32, i32
  }
  func.func @transform_4(%arg0: i32, %arg1: i32, %arg2: memref<4xi32, #tpu.memory_space<smem>>) -> (i32, i32, i32) {
    %c0_i32 = arith.constant 0 : i32
    %c0_i32_0 = arith.constant 0 : i32
    %c0_i32_1 = arith.constant 0 : i32
    return %arg1, %c0_i32, %c0_i32_0 : i32, i32, i32
  }
  func.func @transform_5(%arg0: i32, %arg1: i32, %arg2: memref<4xi32, #tpu.memory_space<smem>>) -> (i32, i32, i32) {
    %c0_i32 = arith.constant 0 : i32
    %c0_i32_0 = arith.constant 0 : i32
    %c0_i32_1 = arith.constant 0 : i32
    return %arg1, %c0_i32, %c0_i32_0 : i32, i32, i32
  }
  func.func @transform_6(%arg0: i32, %arg1: i32, %arg2: memref<4xi32, #tpu.memory_space<smem>>) -> (i32, i32, i32) {
    %c0_i32 = arith.constant 0 : i32
    %c0_i32_0 = arith.constant 0 : i32
    %c0_i32_1 = arith.constant 0 : i32
    return %arg1, %c0_i32, %c0_i32_0 : i32, i32, i32
  }
  func.func @transform_7(%arg0: i32, %arg1: i32, %arg2: memref<4xi32, #tpu.memory_space<smem>>) -> (i32, i32, i32) {
    %c0_i32 = arith.constant 0 : i32
    %c0_i32_0 = arith.constant 0 : i32
    %c0_i32_1 = arith.constant 0 : i32
    return %arg1, %c0_i32, %c0_i32_0 : i32, i32, i32
  }
  func.func @transform_8(%arg0: i32, %arg1: i32, %arg2: memref<4xi32, #tpu.memory_space<smem>>) -> (i32, i32, i32) {
    %c0_i32 = arith.constant 0 : i32
    %c0_i32_0 = arith.constant 0 : i32
    %c0_i32_1 = arith.constant 0 : i32
    return %arg1, %c0_i32, %c0_i32_0 : i32, i32, i32
  }
  func.func @transform_9(%arg0: i32, %arg1: i32, %arg2: memref<4xi32, #tpu.memory_space<smem>>) -> (i32, i32, i32) {
    %c0_i32 = arith.constant 0 : i32
    %c0_i32_0 = arith.constant 0 : i32
    %c0_i32_1 = arith.constant 0 : i32
    return %arg1, %c0_i32, %c0_i32_0 : i32, i32, i32
  }
  func.func @transform_10(%arg0: i32, %arg1: i32, %arg2: memref<4xi32, #tpu.memory_space<smem>>) -> (i32, i32, i32) {
    %c0_i32 = arith.constant 0 : i32
    %c0_i32_0 = arith.constant 0 : i32
    %c0_i32_1 = arith.constant 0 : i32
    return %arg1, %c0_i32, %c0_i32_0 : i32, i32, i32
  }
  func.func @transform_11(%arg0: i32, %arg1: i32, %arg2: memref<4xi32, #tpu.memory_space<smem>>) -> (i32, i32) {
    %c0_i32 = arith.constant 0 : i32
    %c0_i32_0 = arith.constant 0 : i32
    %c0_i32_1 = arith.constant 0 : i32
    return %c0_i32, %c0_i32_0 : i32, i32
  }
  func.func @transform_12(%arg0: i32, %arg1: i32, %arg2: memref<4xi32, #tpu.memory_space<smem>>) -> (i32, i32) {
    %c0_i32 = arith.constant 0 : i32
    %c0_i32_0 = arith.constant 0 : i32
    %c0_i32_1 = arith.constant 0 : i32
    return %c0_i32, %c0_i32_0 : i32, i32
  }
  func.func @transform_13(%arg0: i32, %arg1: i32, %arg2: memref<4xi32, #tpu.memory_space<smem>>) -> (i32, i32, i32) {
    %c0_i32 = arith.constant 0 : i32
    %c0_i32_0 = arith.constant 0 : i32
    %c0_i32_1 = arith.constant 0 : i32
    return %arg0, %c0_i32, %c0_i32_0 : i32, i32, i32
  }
}

</mosaic_0001>

<llo_original>
// kernel: text_encoder_pallas.1
$region0: #{text_encoder_pallas.1}
  #allocation0 [shape = 'u32[]', space=smem, size = 0x4, offset = 0x4, fixed_abs, tag = 'smem constant byte address 0x4 - core index']
  #allocation1 [shape = 'u32[144,128]{1,0:T(1,128)}', space=vmem, size = 0x12000, scoped, tag = 'internal scratch']
  #allocation2 [shape = 'f32[16,32]{1,0:T(8,128)}', space=vmem, size = 0x2000, scoped, tag = 'scratch operand']
  #allocation3 [shape = 'f32[16,32]{1,0:T(8,128)}', space=vmem, size = 0x2000, scoped, tag = 'scratch operand']
  #allocation4 [shape = 's32[1]{0}', space=sflag, size = 0x4, scoped, tag = 'scoped memory for text_encoder_pallas.1']
  #allocation5 [shape = 'u8[512]{0}', space=smem, size = 0x200, scoped, tag = 'prefetched SMEM operand 0']
  %s0 = inlined_call_operand.vmem [shape: s32[4], index: 0, kind: input, shape index: {}]
  %s1 = inlined_call_operand.vmem [shape: f32[32,32], index: 1, kind: input, shape index: {}]
  %s2 = inlined_call_operand.vmem [shape: f32[8,32], index: 2, kind: input, shape index: {}]
  %s3 = inlined_call_operand.vmem [shape: f32[2,4,32], index: 3, kind: input, shape index: {}]
  %s4 = inlined_call_operand.vmem [shape: bf16[2,32,96], index: 4, kind: input, shape index: {}]
  %s5 = inlined_call_operand.vmem [shape: f32[2,1,96], index: 5, kind: input, shape index: {}]
  %s6 = inlined_call_operand.vmem [shape: bf16[2,32,32], index: 6, kind: input, shape index: {}]
  %s7 = inlined_call_operand.vmem [shape: f32[2,1,32], index: 7, kind: input, shape index: {}]
  %s8 = inlined_call_operand.vmem [shape: bf16[2,32,128], index: 8, kind: input, shape index: {}]
  %s9 = inlined_call_operand.vmem [shape: f32[2,1,128], index: 9, kind: input, shape index: {}]
  %s10 = inlined_call_operand.vmem [shape: bf16[2,128,32], index: 10, kind: input, shape index: {}]
  %s11 = inlined_call_operand.vmem [shape: f32[2,1,32], index: 11, kind: input, shape index: {}]
  %s12 = inlined_call_operand.vmem [shape: f32[2,32], index: 12, kind: input, shape index: {}]
  %s13 = inlined_call_operand.vmem [shape: bf16[32,16], index: 13, kind: input, shape index: {}]
  %s14 = inlined_call_operand.hbm [shape: f32[2,2,16], index: 14, kind: output, shape index: {}]
  %s15 = sld [smem:[#allocation0]]
  $region93: #{text_encoder_pallas.1} parent=0
    _
  %s17 = ssub.s32 1, %s15
  %s18 = scalar_select 0, %s17, %s15
  %s19 = sshll.u32 %s0, 4
  %s20 = int_to_ptr.vmem [resolvable:$true] %s19
  %22 = dma.vmem_to_smem %s20, 16, [#allocation5], [#allocation4]
  %23 = dma.done [#allocation4], 16
  %24 = sfence
  $region1: #{text_encoder_pallas.1} parent=0
    #allocation6 [shape = 'u8[2048]{0}', space=vmem, size = 0x800, scoped, tag = 'output window, operand 0']
    #allocation7 [shape = 's32[2]{0}', space=sflag, size = 0x8, scoped, tag = 'scoped memory for text_encoder_pallas.1']
    %25 = vsyncpa [#allocation7], 0
    %s26 = scalar_lea.sflag [#allocation7], 1
    %27 = vsyncpa %s26, 0
    loop: start=0, step=1, limit=6
    $region2: #{text_encoder_pallas.1} parent=1 // loop_pre_header
      _
    $region3: #{text_encoder_pallas.1} parent=1 // loop_header
      %s29 = sphi 0, %s33
      %p30 = scmp.ge.s32.totalorder %s29, 6
      %s36 = sphi 0, %s48
      %s37 = sphi 0, %s44
      %s38 = sphi 0, %s36
      %s39 = sphi 0, %s37
      %s40 = sphi 0, %s38
      %s41 = sphi 0, %s39
      %s51 = sphi 0, %s53
      %s54 = sphi 0, %s51
      %s55 = sphi 0, %s54
      %s71 = sphi 0, %s55
      %s75 = sphi 0, %s75
      %s77 = sphi 0, %s75
      %s78 = sphi 0, %s77
      %s92 = sphi 0, %s78
      %s98 = sphi 0, %s100
      %s101 = sphi 0, %s98
      %s102 = sphi 0, %s101
      %s118 = sphi 0, %s102
      %s124 = sphi 0, %s126
      %s127 = sphi 0, %s124
      %s128 = sphi 0, %s127
      %s144 = sphi 0, %s128
      %s150 = sphi 0, %s152
      %s153 = sphi 0, %s150
      %s154 = sphi 0, %s153
      %s170 = sphi 0, %s154
      %s176 = sphi 0, %s178
      %s179 = sphi 0, %s176
      %s180 = sphi 0, %s179
      %s196 = sphi 0, %s180
      %s202 = sphi 0, %s204
      %s205 = sphi 0, %s202
      %s206 = sphi 0, %s205
      %s222 = sphi 0, %s206
      %s228 = sphi 0, %s230
      %s231 = sphi 0, %s228
      %s232 = sphi 0, %s231
      %s248 = sphi 0, %s232
      %s254 = sphi 0, %s256
      %s257 = sphi 0, %s254
      %s258 = sphi 0, %s257
      %s274 = sphi 0, %s258
      %s280 = sphi 0, %s282
      %s283 = sphi 0, %s280
      %s284 = sphi 0, %s283
      %s300 = sphi 0, %s284
      %s306 = sphi 0, %s308
      %s309 = sphi 0, %s306
      %s310 = sphi 0, %s309
      %s326 = sphi 0, %s310
      %s330 = sphi 0, %s330
      %s332 = sphi 0, %s330
      %s333 = sphi 0, %s332
      %s347 = sphi 0, %s333
      %s351 = sphi 0, %s351
      %s353 = sphi 0, %s351
      %s354 = sphi 0, %s353
      %s368 = sphi 0, %s354
      %s374 = sphi 0, %s376
      %s377 = sphi 0, %s374
      %s378 = sphi 0, %s377
      %s394 = sphi 0, %s378
    $region4: #{text_encoder_pallas.1} parent=1 // loop_header_branch
      %32 = sbr.rel (%p30) target = $region8
    $region5: #{text_encoder_pallas.1} parent=1 // loop_body
      %s34 = ssub.s32 %s29, 1
      %s35 = ssub.s32 %s29, 2
      %s42 = sadd.s32 1, %s37
      %p43 = scmp.ge.s32.totalorder %s42, 2
      %s44 = scalar_select %p43, 0, %s42
      %s45 = sadd.s32 1, %s36
      %s46 = scalar_select %p43, %s45, %s36
      %p47 = scmp.ge.s32.totalorder %s46, 2
      %s48 = scalar_select %p47, 0, %s46
      %s49 = ssub.s32 %s36, %s48
      %p50 = scmp.eq.s32.totalorder %s49, 0
      %s52 = sadd.s32 %s51, 1
      %s53 = scalar_select %p50, %s51, %s52
      %p56 = pneg %p50
      %p57 = scmp.eq.s32.totalorder %s29, 3
      %p58 = por %p56, %p57
      %p59 = scmp.ne.s32.totalorder %s51, %s54
      %p60 = scmp.eq.s32.totalorder %s29, 0
      %p61 = por %p59, %p60
      %p62 = scmp.ne.s32.totalorder %s51, %s54
      %p63 = scmp.eq.s32.totalorder %s34, 3
      %p64 = por %p62, %p63
      %p65 = scmp.ne.s32.totalorder %s54, %s55
      %p66 = scmp.eq.s32.totalorder %s34, 0
      %p67 = por %p65, %p66
      %p68 = scmp.ne.s32.totalorder %s54, %s55
      %p69 = scmp.eq.s32.totalorder %s35, 3
      %p70 = por %p68, %p69
      %p72 = scmp.ne.s32.totalorder %s55, %s71
      %p73 = scmp.eq.s32.totalorder %s35, 0
      %p74 = por %p72, %p73
      %s76 = sadd.s32 %s75, 1
      %p79 = scmp.eq.s32.totalorder %s29, 3
      %p80 = scmp.ne.s32.totalorder %s75, %s77
      %p81 = scmp.eq.s32.totalorder %s29, 0
      %p82 = por %p80, %p81
      %p83 = scmp.ne.s32.totalorder %s75, %s77
      %p84 = scmp.eq.s32.totalorder %s34, 3
      %p85 = por %p83, %p84
      %p86 = scmp.ne.s32.totalorder %s77, %s78
      %p87 = scmp.eq.s32.totalorder %s34, 0
      %p88 = por %p86, %p87
      %p89 = scmp.ne.s32.totalorder %s77, %s78
      %p90 = scmp.eq.s32.totalorder %s35, 3
      %p91 = por %p89, %p90
      %p93 = scmp.ne.s32.totalorder %s78, %s92
      %p94 = scmp.eq.s32.totalorder %s35, 0
      %p95 = por %p93, %p94
      %s96 = ssub.s32 %s37, %s44
      %p97 = scmp.eq.s32.totalorder %s96, 0
      %s99 = sadd.s32 %s98, 1
      %s100 = scalar_select %p97, %s98, %s99
      %p103 = pneg %p97
      %p104 = scmp.eq.s32.totalorder %s29, 3
      %p105 = por %p103, %p104
      %p106 = scmp.ne.s32.totalorder %s98, %s101
      %p107 = scmp.eq.s32.totalorder %s29, 0
      %p108 = por %p106, %p107
      %p109 = scmp.ne.s32.totalorder %s98, %s101
      %p110 = scmp.eq.s32.totalorder %s34, 3
      %p111 = por %p109, %p110
      %p112 = scmp.ne.s32.totalorder %s101, %s102
      %p113 = scmp.eq.s32.totalorder %s34, 0
      %p114 = por %p112, %p113
      %p115 = scmp.ne.s32.totalorder %s101, %s102
      %p116 = scmp.eq.s32.totalorder %s35, 3
      %p117 = por %p115, %p116
      %p119 = scmp.ne.s32.totalorder %s102, %s118
      %p120 = scmp.eq.s32.totalorder %s35, 0
      %p121 = por %p119, %p120
      %s122 = ssub.s32 %s37, %s44
      %p123 = scmp.eq.s32.totalorder %s122, 0
      %s125 = sadd.s32 %s124, 1
      %s126 = scalar_select %p123, %s124, %s125
      %p129 = pneg %p123
      %p130 = scmp.eq.s32.totalorder %s29, 3
      %p131 = por %p129, %p130
      %p132 = scmp.ne.s32.totalorder %s124, %s127
      %p133 = scmp.eq.s32.totalorder %s29, 0
      %p134 = por %p132, %p133
      %p135 = scmp.ne.s32.totalorder %s124, %s127
      %p136 = scmp.eq.s32.totalorder %s34, 3
      %p137 = por %p135, %p136
      %p138 = scmp.ne.s32.totalorder %s127, %s128
      %p139 = scmp.eq.s32.totalorder %s34, 0
      %p140 = por %p138, %p139
      %p141 = scmp.ne.s32.totalorder %s127, %s128
      %p142 = scmp.eq.s32.totalorder %s35, 3
      %p143 = por %p141, %p142
      %p145 = scmp.ne.s32.totalorder %s128, %s144
      %p146 = scmp.eq.s32.totalorder %s35, 0
      %p147 = por %p145, %p146
      %s148 = ssub.s32 %s37, %s44
      %p149 = scmp.eq.s32.totalorder %s148, 0
      %s151 = sadd.s32 %s150, 1
      %s152 = scalar_select %p149, %s150, %s151
      %p155 = pneg %p149
      %p156 = scmp.eq.s32.totalorder %s29, 3
      %p157 = por %p155, %p156
      %p158 = scmp.ne.s32.totalorder %s150, %s153
      %p159 = scmp.eq.s32.totalorder %s29, 0
      %p160 = por %p158, %p159
      %p161 = scmp.ne.s32.totalorder %s150, %s153
      %p162 = scmp.eq.s32.totalorder %s34, 3
      %p163 = por %p161, %p162
      %p164 = scmp.ne.s32.totalorder %s153, %s154
      %p165 = scmp.eq.s32.totalorder %s34, 0
      %p166 = por %p164, %p165
      %p167 = scmp.ne.s32.totalorder %s153, %s154
      %p168 = scmp.eq.s32.totalorder %s35, 3
      %p169 = por %p167, %p168
      %p171 = scmp.ne.s32.totalorder %s154, %s170
      %p172 = scmp.eq.s32.totalorder %s35, 0
      %p173 = por %p171, %p172
      %s174 = ssub.s32 %s37, %s44
      %p175 = scmp.eq.s32.totalorder %s174, 0
      %s177 = sadd.s32 %s176, 1
      %s178 = scalar_select %p175, %s176, %s177
      %p181 = pneg %p175
      %p182 = scmp.eq.s32.totalorder %s29, 3
      %p183 = por %p181, %p182
      %p184 = scmp.ne.s32.totalorder %s176, %s179
      %p185 = scmp.eq.s32.totalorder %s29, 0
      %p186 = por %p184, %p185
      %p187 = scmp.ne.s32.totalorder %s176, %s179
      %p188 = scmp.eq.s32.totalorder %s34, 3
      %p189 = por %p187, %p188
      %p190 = scmp.ne.s32.totalorder %s179, %s180
      %p191 = scmp.eq.s32.totalorder %s34, 0
      %p192 = por %p190, %p191
      %p193 = scmp.ne.s32.totalorder %s179, %s180
      %p194 = scmp.eq.s32.totalorder %s35, 3
      %p195 = por %p193, %p194
      %p197 = scmp.ne.s32.totalorder %s180, %s196
      %p198 = scmp.eq.s32.totalorder %s35, 0
      %p199 = por %p197, %p198
      %s200 = ssub.s32 %s37, %s44
      %p201 = scmp.eq.s32.totalorder %s200, 0
      %s203 = sadd.s32 %s202, 1
      %s204 = scalar_select %p201, %s202, %s203
      %p207 = pneg %p201
      %p208 = scmp.eq.s32.totalorder %s29, 3
      %p209 = por %p207, %p208
      %p210 = scmp.ne.s32.totalorder %s202, %s205
      %p211 = scmp.eq.s32.totalorder %s29, 0
      %p212 = por %p210, %p211
      %p213 = scmp.ne.s32.totalorder %s202, %s205
      %p214 = scmp.eq.s32.totalorder %s34, 3
      %p215 = por %p213, %p214
      %p216 = scmp.ne.s32.totalorder %s205, %s206
      %p217 = scmp.eq.s32.totalorder %s34, 0
      %p218 = por %p216, %p217
      %p219 = scmp.ne.s32.totalorder %s205, %s206
      %p220 = scmp.eq.s32.totalorder %s35, 3
      %p221 = por %p219, %p220
      %p223 = scmp.ne.s32.totalorder %s206, %s222
      %p224 = scmp.eq.s32.totalorder %s35, 0
      %p225 = por %p223, %p224
      %s226 = ssub.s32 %s37, %s44
      %p227 = scmp.eq.s32.totalorder %s226, 0
      %s229 = sadd.s32 %s228, 1
      %s230 = scalar_select %p227, %s228, %s229
      %p233 = pneg %p227
      %p234 = scmp.eq.s32.totalorder %s29, 3
      %p235 = por %p233, %p234
      %p236 = scmp.ne.s32.totalorder %s228, %s231
      %p237 = scmp.eq.s32.totalorder %s29, 0
      %p238 = por %p236, %p237
      %p239 = scmp.ne.s32.totalorder %s228, %s231
      %p240 = scmp.eq.s32.totalorder %s34, 3
      %p241 = por %p239, %p240
      %p242 = scmp.ne.s32.totalorder %s231, %s232
      %p243 = scmp.eq.s32.totalorder %s34, 0
      %p244 = por %p242, %p243
      %p245 = scmp.ne.s32.totalorder %s231, %s232
      %p246 = scmp.eq.s32.totalorder %s35, 3
      %p247 = por %p245, %p246
      %p249 = scmp.ne.s32.totalorder %s232, %s248
      %p250 = scmp.eq.s32.totalorder %s35, 0
      %p251 = por %p249, %p250
      %s252 = ssub.s32 %s37, %s44
      %p253 = scmp.eq.s32.totalorder %s252, 0
      %s255 = sadd.s32 %s254, 1
      %s256 = scalar_select %p253, %s254, %s255
      %p259 = pneg %p253
      %p260 = scmp.eq.s32.totalorder %s29, 3
      %p261 = por %p259, %p260
      %p262 = scmp.ne.s32.totalorder %s254, %s257
      %p263 = scmp.eq.s32.totalorder %s29, 0
      %p264 = por %p262, %p263
      %p265 = scmp.ne.s32.totalorder %s254, %s257
      %p266 = scmp.eq.s32.totalorder %s34, 3
      %p267 = por %p265, %p266
      %p268 = scmp.ne.s32.totalorder %s257, %s258
      %p269 = scmp.eq.s32.totalorder %s34, 0
      %p270 = por %p268, %p269
      %p271 = scmp.ne.s32.totalorder %s257, %s258
      %p272 = scmp.eq.s32.totalorder %s35, 3
      %p273 = por %p271, %p272
      %p275 = scmp.ne.s32.totalorder %s258, %s274
      %p276 = scmp.eq.s32.totalorder %s35, 0
      %p277 = por %p275, %p276
      %s278 = ssub.s32 %s37, %s44
      %p279 = scmp.eq.s32.totalorder %s278, 0
      %s281 = sadd.s32 %s280, 1
      %s282 = scalar_select %p279, %s280, %s281
      %p285 = pneg %p279
      %p286 = scmp.eq.s32.totalorder %s29, 3
      %p287 = por %p285, %p286
      %p288 = scmp.ne.s32.totalorder %s280, %s283
      %p289 = scmp.eq.s32.totalorder %s29, 0
      %p290 = por %p288, %p289
      %p291 = scmp.ne.s32.totalorder %s280, %s283
      %p292 = scmp.eq.s32.totalorder %s34, 3
      %p293 = por %p291, %p292
      %p294 = scmp.ne.s32.totalorder %s283, %s284
      %p295 = scmp.eq.s32.totalorder %s34, 0
      %p296 = por %p294, %p295
      %p297 = scmp.ne.s32.totalorder %s283, %s284
      %p298 = scmp.eq.s32.totalorder %s35, 3
      %p299 = por %p297, %p298
      %p301 = scmp.ne.s32.totalorder %s284, %s300
      %p302 = scmp.eq.s32.totalorder %s35, 0
      %p303 = por %p301, %p302
      %s304 = ssub.s32 %s37, %s44
      %p305 = scmp.eq.s32.totalorder %s304, 0
      %s307 = sadd.s32 %s306, 1
      %s308 = scalar_select %p305, %s306, %s307
      %p311 = pneg %p305
      %p312 = scmp.eq.s32.totalorder %s29, 3
      %p313 = por %p311, %p312
      %p314 = scmp.ne.s32.totalorder %s306, %s309
      %p315 = scmp.eq.s32.totalorder %s29, 0
      %p316 = por %p314, %p315
      %p317 = scmp.ne.s32.totalorder %s306, %s309
      %p318 = scmp.eq.s32.totalorder %s34, 3
      %p319 = por %p317, %p318
      %p320 = scmp.ne.s32.totalorder %s309, %s310
      %p321 = scmp.eq.s32.totalorder %s34, 0
      %p322 = por %p320, %p321
      %p323 = scmp.ne.s32.totalorder %s309, %s310
      %p324 = scmp.eq.s32.totalorder %s35, 3
      %p325 = por %p323, %p324
      %p327 = scmp.ne.s32.totalorder %s310, %s326
      %p328 = scmp.eq.s32.totalorder %s35, 0
      %p329 = por %p327, %p328
      %s331 = sadd.s32 %s330, 1
      %p334 = scmp.eq.s32.totalorder %s29, 3
      %p335 = scmp.ne.s32.totalorder %s330, %s332
      %p336 = scmp.eq.s32.totalorder %s29, 0
      %p337 = por %p335, %p336
      %p338 = scmp.ne.s32.totalorder %s330, %s332
      %p339 = scmp.eq.s32.totalorder %s34, 3
      %p340 = por %p338, %p339
      %p341 = scmp.ne.s32.totalorder %s332, %s333
      %p342 = scmp.eq.s32.totalorder %s34, 0
      %p343 = por %p341, %p342
      %p344 = scmp.ne.s32.totalorder %s332, %s333
      %p345 = scmp.eq.s32.totalorder %s35, 3
      %p346 = por %p344, %p345
      %p348 = scmp.ne.s32.totalorder %s333, %s347
      %p349 = scmp.eq.s32.totalorder %s35, 0
      %p350 = por %p348, %p349
      %s352 = sadd.s32 %s351, 1
      %p355 = scmp.eq.s32.totalorder %s29, 3
      %p356 = scmp.ne.s32.totalorder %s351, %s353
      %p357 = scmp.eq.s32.totalorder %s29, 0
      %p358 = por %p356, %p357
      %p359 = scmp.ne.s32.totalorder %s351, %s353
      %p360 = scmp.eq.s32.totalorder %s34, 3
      %p361 = por %p359, %p360
      %p362 = scmp.ne.s32.totalorder %s353, %s354
      %p363 = scmp.eq.s32.totalorder %s34, 0
      %p364 = por %p362, %p363
      %p365 = scmp.ne.s32.totalorder %s353, %s354
      %p366 = scmp.eq.s32.totalorder %s35, 3
      %p367 = por %p365, %p366
      %p369 = scmp.ne.s32.totalorder %s354, %s368
      %p370 = scmp.eq.s32.totalorder %s35, 0
      %p371 = por %p369, %p370
      %s372 = ssub.s32 %s36, %s48
      %p373 = scmp.eq.s32.totalorder %s372, 0
      %s375 = sadd.s32 %s374, 1
      %s376 = scalar_select %p373, %s374, %s375
      %p379 = pneg %p373
      %p380 = scmp.eq.s32.totalorder %s29, 3
      %p381 = por %p379, %p380
      %p382 = scmp.ne.s32.totalorder %s374, %s377
      %p383 = scmp.eq.s32.totalorder %s29, 0
      %p384 = por %p382, %p383
      %p385 = scmp.ne.s32.totalorder %s374, %s377
      %p386 = scmp.eq.s32.totalorder %s34, 3
      %p387 = por %p385, %p386
      %p388 = scmp.ne.s32.totalorder %s377, %s378
      %p389 = scmp.eq.s32.totalorder %s34, 0
      %p390 = por %p388, %p389
      %p391 = scmp.ne.s32.totalorder %s377, %s378
      %p392 = scmp.eq.s32.totalorder %s35, 3
      %p393 = por %p391, %p392
      %p395 = scmp.ne.s32.totalorder %s378, %s394
      %p396 = scmp.eq.s32.totalorder %s35, 0
      %p397 = por %p395, %p396
      %p398 = scmp.le.s32.totalorder 1, %s29
      %p399 = scmp.lt.s32.totalorder %s29, 5
      %p400 = pnand %p398, %p399
      %p401 = pneg %p400
      // Predicated region
      $region9: #{text_encoder_pallas.1} parent=5 // pred_check
        _
      $region10: #{text_encoder_pallas.1} parent=5 // pred_check_branch
        %403 = sbr.rel (%p400) target = $region12
      $region11: #{text_encoder_pallas.1} parent=5 // pred_region
        %s404 = ssub.s32 %s29, 1
        // Predicated region
        $region13: #{text_encoder_pallas.1} parent=11 // pred_check
          %p405 = pneg %p88
        $region14: #{text_encoder_pallas.1} parent=11 // pred_check_branch
          %407 = sbr.rel (%p405) target = $region16
        $region15: #{text_encoder_pallas.1} parent=11 // pred_region
          _
        $region16: #{text_encoder_pallas.1} parent=11 // pred_fallthru
          _
        // Predicated region
        $region17: #{text_encoder_pallas.1} parent=11 // pred_check
          %p408 = pneg %p343
        $region18: #{text_encoder_pallas.1} parent=11 // pred_check_branch
          %410 = sbr.rel (%p408) target = $region20
        $region19: #{text_encoder_pallas.1} parent=11 // pred_region
          _
        $region20: #{text_encoder_pallas.1} parent=11 // pred_fallthru
          _
        // Predicated region
        $region21: #{text_encoder_pallas.1} parent=11 // pred_check
          %p411 = pneg %p364
        $region22: #{text_encoder_pallas.1} parent=11 // pred_check_branch
          %413 = sbr.rel (%p411) target = $region24
        $region23: #{text_encoder_pallas.1} parent=11 // pred_region
          _
        $region24: #{text_encoder_pallas.1} parent=11 // pred_fallthru
          _
      $region12: #{text_encoder_pallas.1} parent=5 // pred_fallthru
        _
      %p414 = scmp.lt.s32.totalorder %s29, 4
      // Predicated region
      $region25: #{text_encoder_pallas.1} parent=5 // pred_check
        %p415 = pneg %p414
      $region26: #{text_encoder_pallas.1} parent=5 // pred_check_branch
        %417 = sbr.rel (%p415) target = $region28
      $region27: #{text_encoder_pallas.1} parent=5 // pred_region
        // Predicated region
        $region29: #{text_encoder_pallas.1} parent=27 // pred_check
          %p418 = pneg %p61
        $region30: #{text_encoder_pallas.1} parent=27 // pred_check_branch
          %420 = sbr.rel (%p418) target = $region32
        $region31: #{text_encoder_pallas.1} parent=27 // pred_region
          %s421 = smul.u32 2, %s36
          %p422 = scmp.lt.s32.totalorder %s421, 3
          %s423 = scalar_select %p422, %s421, 3
          %s424 = smul.addr %s423, 8
          %s425 = scalar_lea.vmem %s1, %s424
          %s426 = smul.u32 2, %s36
        $region32: #{text_encoder_pallas.1} parent=27 // pred_fallthru
          _
        // Predicated region
        $region33: #{text_encoder_pallas.1} parent=27 // pred_check
          %p427 = pneg %p108
        $region34: #{text_encoder_pallas.1} parent=27 // pred_check_branch
          %429 = sbr.rel (%p427) target = $region36
        $region35: #{text_encoder_pallas.1} parent=27 // pred_region
          %p430 = scmp.lt.s32.totalorder %s37, 1
          %s431 = scalar_select %p430, %s37, 1
          %s432 = smul.addr %s431, 4
          %s433 = scalar_lea.vmem %s3, %s432
        $region36: #{text_encoder_pallas.1} parent=27 // pred_fallthru
          _
        // Predicated region
        $region37: #{text_encoder_pallas.1} parent=27 // pred_check
          %p434 = pneg %p134
        $region38: #{text_encoder_pallas.1} parent=27 // pred_check_branch
          %436 = sbr.rel (%p434) target = $region40
        $region39: #{text_encoder_pallas.1} parent=27 // pred_region
          %p437 = scmp.lt.s32.totalorder %s37, 1
          %s438 = scalar_select %p437, %s37, 1
          %s439 = smul.addr %s438, 4
          %s440 = smul.addr %s439, 4
          %s441 = scalar_lea.vmem %s4, %s440
        $region40: #{text_encoder_pallas.1} parent=27 // pred_fallthru
          _
        // Predicated region
        $region41: #{text_encoder_pallas.1} parent=27 // pred_check
          %p442 = pneg %p160
        $region42: #{text_encoder_pallas.1} parent=27 // pred_check_branch
          %444 = sbr.rel (%p442) target = $region44
        $region43: #{text_encoder_pallas.1} parent=27 // pred_region
          %p445 = scmp.lt.s32.totalorder %s37, 1
          %s446 = scalar_select %p445, %s37, 1
          %s447 = scalar_lea.vmem %s5, %s446
        $region44: #{text_encoder_pallas.1} parent=27 // pred_fallthru
          _
        // Predicated region
        $region45: #{text_encoder_pallas.1} parent=27 // pred_check
          %p448 = pneg %p186
        $region46: #{text_encoder_pallas.1} parent=27 // pred_check_branch
          %450 = sbr.rel (%p448) target = $region48
        $region47: #{text_encoder_pallas.1} parent=27 // pred_region
          %p451 = scmp.lt.s32.totalorder %s37, 1
          %s452 = scalar_select %p451, %s37, 1
          %s453 = smul.addr %s452, 4
          %s454 = smul.addr %s453, 4
          %s455 = scalar_lea.vmem %s6, %s454
        $region48: #{text_encoder_pallas.1} parent=27 // pred_fallthru
          _
        // Predicated region
        $region49: #{text_encoder_pallas.1} parent=27 // pred_check
          %p456 = pneg %p212
        $region50: #{text_encoder_pallas.1} parent=27 // pred_check_branch
          %458 = sbr.rel (%p456) target = $region52
        $region51: #{text_encoder_pallas.1} parent=27 // pred_region
          %p459 = scmp.lt.s32.totalorder %s37, 1
          %s460 = scalar_select %p459, %s37, 1
          %s461 = scalar_lea.vmem %s7, %s460
        $region52: #{text_encoder_pallas.1} parent=27 // pred_fallthru
          _
        // Predicated region
        $region53: #{text_encoder_pallas.1} parent=27 // pred_check
          %p462 = pneg %p238
        $region54: #{text_encoder_pallas.1} parent=27 // pred_check_branch
          %464 = sbr.rel (%p462) target = $region56
        $region55: #{text_encoder_pallas.1} parent=27 // pred_region
          %p465 = scmp.lt.s32.totalorder %s37, 1
          %s466 = scalar_select %p465, %s37, 1
          %s467 = smul.addr %s466, 4
          %s468 = smul.addr %s467, 4
          %s469 = scalar_lea.vmem %s8, %s468
        $region56: #{text_encoder_pallas.1} parent=27 // pred_fallthru
          _
        // Predicated region
        $region57: #{text_encoder_pallas.1} parent=27 // pred_check
          %p470 = pneg %p264
        $region58: #{text_encoder_pallas.1} parent=27 // pred_check_branch
          %472 = sbr.rel (%p470) target = $region60
        $region59: #{text_encoder_pallas.1} parent=27 // pred_region
          %p473 = scmp.lt.s32.totalorder %s37, 1
          %s474 = scalar_select %p473, %s37, 1
          %s475 = scalar_lea.vmem %s9, %s474
        $region60: #{text_encoder_pallas.1} parent=27 // pred_fallthru
          _
        // Predicated region
        $region61: #{text_encoder_pallas.1} parent=27 // pred_check
          %p476 = pneg %p290
        $region62: #{text_encoder_pallas.1} parent=27 // pred_check_branch
          %478 = sbr.rel (%p476) target = $region64
        $region63: #{text_encoder_pallas.1} parent=27 // pred_region
          %p479 = scmp.lt.s32.totalorder %s37, 1
          %s480 = scalar_select %p479, %s37, 1
          %s481 = smul.addr %s480, 16
          %s482 = smul.addr %s481, 4
          %s483 = scalar_lea.vmem %s10, %s482
        $region64: #{text_encoder_pallas.1} parent=27 // pred_fallthru
          _
        // Predicated region
        $region65: #{text_encoder_pallas.1} parent=27 // pred_check
          %p484 = pneg %p316
        $region66: #{text_encoder_pallas.1} parent=27 // pred_check_branch
          %486 = sbr.rel (%p484) target = $region68
        $region67: #{text_encoder_pallas.1} parent=27 // pred_region
          %p487 = scmp.lt.s32.totalorder %s37, 1
          %s488 = scalar_select %p487, %s37, 1
          %s489 = scalar_lea.vmem %s11, %s488
        $region68: #{text_encoder_pallas.1} parent=27 // pred_fallthru
          _
      $region28: #{text_encoder_pallas.1} parent=5 // pred_fallthru
        _
      %p490 = scmp.le.s32.totalorder 1, %s29
      %p491 = scmp.lt.s32.totalorder %s29, 5
      %p492 = pnand %p490, %p491
      %p493 = pneg %p492
      // Predicated region
      $region69: #{text_encoder_pallas.1} parent=5 // pred_check
        _
      $region70: #{text_encoder_pallas.1} parent=5 // pred_check_branch
        %495 = sbr.rel (%p492) target = $region72
      $region71: #{text_encoder_pallas.1} parent=5 // pred_region
        %s496 = ssub.s32 %s29, 1
        %s497 = smul.u32 2, %s38
        %p498 = scmp.lt.s32.totalorder %s497, 3
        %s499 = scalar_select %p498, %s497, 3
        %s500 = smul.addr %s499, 8
        %s501 = scalar_lea.vmem %s1, %s500
        %p502 = pneg %p67
        %p503 = pneg %p64
        %p504 = pneg %p88
        %p505 = pneg %p85
        %p506 = scmp.lt.s32.totalorder %s39, 1
        %s507 = scalar_select %p506, %s39, 1
        %s508 = smul.addr %s507, 4
        %s509 = scalar_lea.vmem %s3, %s508
        %p510 = pneg %p114
        %p511 = pneg %p111
        %p512 = scmp.lt.s32.totalorder %s39, 1
        %s513 = scalar_select %p512, %s39, 1
        %s514 = smul.addr %s513, 4
        %s515 = smul.addr %s514, 4
        %s516 = scalar_lea.vmem %s4, %s515
        %p517 = pneg %p140
        %p518 = pneg %p137
        %p519 = scmp.lt.s32.totalorder %s39, 1
        %s520 = scalar_select %p519, %s39, 1
        %s521 = scalar_lea.vmem %s5, %s520
        %p522 = pneg %p166
        %p523 = pneg %p163
        %p524 = scmp.lt.s32.totalorder %s39, 1
        %s525 = scalar_select %p524, %s39, 1
        %s526 = smul.addr %s525, 4
        %s527 = smul.addr %s526, 4
        %s528 = scalar_lea.vmem %s6, %s527
        %p529 = pneg %p192
        %p530 = pneg %p189
        %p531 = scmp.lt.s32.totalorder %s39, 1
        %s532 = scalar_select %p531, %s39, 1
        %s533 = scalar_lea.vmem %s7, %s532
        %p534 = pneg %p218
        %p535 = pneg %p215
        %p536 = scmp.lt.s32.totalorder %s39, 1
        %s537 = scalar_select %p536, %s39, 1
        %s538 = smul.addr %s537, 4
        %s539 = smul.addr %s538, 4
        %s540 = scalar_lea.vmem %s8, %s539
        %p541 = pneg %p244
        %p542 = pneg %p241
        %p543 = scmp.lt.s32.totalorder %s39, 1
        %s544 = scalar_select %p543, %s39, 1
        %s545 = scalar_lea.vmem %s9, %s544
        %p546 = pneg %p270
        %p547 = pneg %p267
        %p548 = scmp.lt.s32.totalorder %s39, 1
        %s549 = scalar_select %p548, %s39, 1
        %s550 = smul.addr %s549, 16
        %s551 = smul.addr %s550, 4
        %s552 = scalar_lea.vmem %s10, %s551
        %p553 = pneg %p296
        %p554 = pneg %p293
        %p555 = scmp.lt.s32.totalorder %s39, 1
        %s556 = scalar_select %p555, %s39, 1
        %s557 = scalar_lea.vmem %s11, %s556
        %p558 = pneg %p322
        %p559 = pneg %p319
        %p560 = pneg %p343
        %p561 = pneg %p340
        %p562 = pneg %p364
        %p563 = pneg %p361
        %p564 = pneg %p390
        %p565 = pneg %p387
        %s566 = sand.u32 %s377, 1
        %s567 = scalar_lea.sflag [#allocation7], %s566
        %s568 = sand.u32 %s377, 1
        %s569 = smul.addr %s568, 2
        %s570 = scalar_lea.vmem [#allocation6], %s569
        %s571 = smul.u32 2, %s38
        %p572 = scmp.lt.s32.totalorder %s571, 3
        %s573 = scalar_select %p572, %s571, 3
        %s574 = smul.addr %s573, 8
        %s575 = scalar_lea.vmem %s1, %s574
        %s576 = smul.u32 2, %s38
        %p577 = scmp.lt.s32.totalorder %s39, 1
        %s578 = scalar_select %p577, %s39, 1
        %s579 = smul.addr %s578, 4
        %s580 = scalar_lea.vmem %s3, %s579
        %p581 = scmp.lt.s32.totalorder %s39, 1
        %s582 = scalar_select %p581, %s39, 1
        %s583 = smul.addr %s582, 4
        %s584 = smul.addr %s583, 4
        %s585 = scalar_lea.vmem %s4, %s584
        %p586 = scmp.lt.s32.totalorder %s39, 1
        %s587 = scalar_select %p586, %s39, 1
        %s588 = scalar_lea.vmem %s5, %s587
        %p589 = scmp.lt.s32.totalorder %s39, 1
        %s590 = scalar_select %p589, %s39, 1
        %s591 = smul.addr %s590, 4
        %s592 = smul.addr %s591, 4
        %s593 = scalar_lea.vmem %s6, %s592
        %p594 = scmp.lt.s32.totalorder %s39, 1
        %s595 = scalar_select %p594, %s39, 1
        %s596 = scalar_lea.vmem %s7, %s595
        %p597 = scmp.lt.s32.totalorder %s39, 1
        %s598 = scalar_select %p597, %s39, 1
        %s599 = smul.addr %s598, 4
        %s600 = smul.addr %s599, 4
        %s601 = scalar_lea.vmem %s8, %s600
        %p602 = scmp.lt.s32.totalorder %s39, 1
        %s603 = scalar_select %p602, %s39, 1
        %s604 = scalar_lea.vmem %s9, %s603
        %p605 = scmp.lt.s32.totalorder %s39, 1
        %s606 = scalar_select %p605, %s39, 1
        %s607 = smul.addr %s606, 16
        %s608 = smul.addr %s607, 4
        %s609 = scalar_lea.vmem %s10, %s608
        %p610 = scmp.lt.s32.totalorder %s39, 1
        %s611 = scalar_select %p610, %s39, 1
        %s612 = scalar_lea.vmem %s11, %s611
        %p614 = scmp.eq.s32.totalorder %s39, 0
        // Predicated region
        $region73: #{text_encoder_pallas.1} parent=71 // pred_check
          %p615 = pneg %p614
        $region74: #{text_encoder_pallas.1} parent=71 // pred_check_branch
          %617 = sbr.rel (%p615) target = $region76
        $region75: #{text_encoder_pallas.1} parent=71 // pred_region
          %v618 = vld [vmem:[%s575] sm:$0xff]
          %v619 = vld [vmem:[%s2] sm:$0xff]
          %v620 = vadd.f32 %v618, %v619
          %vm621 = vcmask 261120
          %622 = vst.msk [vmem:[#allocation2] sm:$0xff] %vm621, %v620
          %v623 = vld [vmem:[%s575 + $0x8] sm:$0xff]
          %v624 = vld [vmem:[%s2] sm:$0xff]
          %v625 = vadd.f32 %v623, %v624
          %626 = vst.msk [vmem:[#allocation2 + $0x8] sm:$0xff] %vm621, %v625
        $region76: #{text_encoder_pallas.1} parent=71 // pred_fallthru
          _
        %v627 = vlaneseq
        %v628 = vshrl.u32 %v627, 7
        %v629 = vlaneseq
        %v630 = vand.u32 %v629, 127
        %vm631 = vcmp.le.s32.totalorder %v630, %v628
        %v632 = vsel %vm631, 0.0, -1e+30
        %v633 = vld [vmem:[#allocation2] sm:$0xff]
        %v634 = vld [vmem:[#allocation2 + $0x8] sm:$0xff]
        %v635 = vld [vmem:[%s580] sm:$0xf]
        %vm636 = vcmask 261120
        %v637 = vsel %vm636, %v633, 0.0
        %638 = vadd.xlane.f32.xlu0 %v637
        %v639 = vpop.xlane.xlu0 %638
        %v640 = vsel %vm636, %v634, 0.0
        %641 = vadd.xlane.f32.xlu0 %v640
        %v642 = vpop.xlane.xlu0 %641
        %v643 = vrcp.pop 32.0
        %v644 = vmul.f32 %v639, %v643
        %v645 = vmul.f32 %v642, %v643
        %v646 = vsub.f32 %v633, %v644
        %v647 = vsub.f32 %v634, %v645
        %v648 = vmul.f32 %v646, %v646
        %v649 = vmul.f32 %v647, %v647
        %v650 = vsel %vm636, %v648, 0.0
        %651 = vadd.xlane.f32.xlu0 %v650
        %v652 = vpop.xlane.xlu0 %651
        %v653 = vsel %vm636, %v649, 0.0
        %654 = vadd.xlane.f32.xlu0 %v653
        %v655 = vpop.xlane.xlu0 %654
        %v656 = vmul.f32 %v652, %v643
        %v657 = vmul.f32 %v655, %v643
        %v658 = vadd.f32 %v656, 1e-05
        %v659 = vadd.f32 %v657, 1e-05
        %v660 = vrsqrt.pop %v658
        %v661 = vrsqrt.pop %v659
        %v662 = vmul.f32 %v646, %v660
        %v663 = vmul.f32 %v647, %v661
        %v664 = vlaneseq
        %v665 = vshrl.u32 %v664, 7
        %v666 = vsub.s32 0, %v665
        %v667 = vrot.slane %v635, %v666
        %v668 = vmul.f32 %v662, %v667
        %v669 = vmul.f32 %v663, %v667
        %v670 = vlaneseq
        %v671 = vshrl.u32 %v670, 7
        %v672 = vsub.s32 1, %v671
        %v673 = vrot.slane %v635, %v672
        %v674 = vadd.f32 %v668, %v673
        %v675 = vadd.f32 %v669, %v673
        %v676 = vpack.c.bf16 %v675, %v674
        %v677 = vld [vmem:[%s585] sm:$0xf]
        %v678 = vld [vmem:[%s585 + $0x4] sm:$0xf]
        %v679 = vld [vmem:[%s585 + $0x8] sm:$0xf]
        %v680 = vld [vmem:[%s585 + $0xc] sm:$0xf]
        %v681 = vld [vmem:[%s588] sm:$0x1]
        %v683 = vlaneseq
        %v684 = vshrl.u32 %v683, 7
        %v685 = vsub.s32 0, %v684
        %v686 = vrot.slane %v681, %v685
        %v692 = vunpack.c.l.b16 %v677
        %v693 = vunpack.c.l.b16 %v678
        %v694 = vunpack.c.l.b16 %v679
        %v695 = vunpack.c.l.b16 %v680
        %v696 = vpack.c.b16 %v693, %v692
        %v697 = vpack.c.b16 %v695, %v694
        %v701 = vsel %vm636, %v676, 0
        %703 = vmatprep.subr.bf16.mxu0 0
        %704 = vmatpush1.bf16.msra.mxu0 %v696
        %705 = vmatprep.subr.bf16.mxu0 0
        %706 = vmatpush1.bf16.msra.mxu0 %v697
        %707 = vmatprep.subr.bf16.mxu0 0
        %708 = vmatpush1.bf16.msra.mxu0 0
        %709 = vmatprep.subr.bf16.mxu0 0
        %710 = vmatpush1.bf16.msra.mxu0 0
        %711 = vmatprep.subr.bf16.mxu0 0
        %712 = vmatpush1.bf16.msra.mxu0 0
        %713 = vmatprep.subr.bf16.mxu0 0
        %714 = vmatpush1.bf16.msra.mxu0 0
        %715 = vmatprep.subr.bf16.mxu0 0
        %716 = vmatpush1.bf16.msra.mxu0 0
        %717 = vmatprep.subr.bf16.mxu0 0
        %718 = vmatpush1.bf16.msra.mxu0 0
        %719 = vmatprep.subr.bf16.mxu0 0
        %720 = vmatpush1.bf16.msra.mxu0 0
        %721 = vmatprep.subr.bf16.mxu0 0
        %722 = vmatpush1.bf16.msra.mxu0 0
        %723 = vmatprep.subr.bf16.mxu0 0
        %724 = vmatpush1.bf16.msra.mxu0 0
        %725 = vmatprep.subr.bf16.mxu0 0
        %726 = vmatpush1.bf16.msra.mxu0 0
        %727 = vmatprep.subr.bf16.mxu0 0
        %728 = vmatpush1.bf16.msra.mxu0 0
        %729 = vmatprep.subr.bf16.mxu0 0
        %730 = vmatpush1.bf16.msra.mxu0 0
        %731 = vmatprep.subr.bf16.mxu0 0
        %732 = vmatpush1.bf16.msra.mxu0 0
        %733 = vmatprep.subr.bf16.mxu0 0
        %734 = vmatpush1.bf16.msra.mxu0 0
        %735 = vmatprep.mubr.bf16.mxu0 0
        %736 = vmatmul.mubr.bf16.gmra.mrb[0].mxu0 %v701
        %v737 = vpop.f32.mrb[0].mxu0
        %v738 = vadd.f32 %v686, %v737
        %v739 = vpop.f32.mrb[0].mxu0
        %v740 = vpop.f32.mrb[0].mxu0
        %v741 = vadd.f32 %v686, %v740
        %v742 = vpop.f32.mrb[0].mxu0
        %743 = vdwg.mxu0
        %v744 = vpack.c.bf16 %v738, %v738
        %746 = vrot.lane.b32.xlu0 %v744, 96
        %v747 = vpop.permute.xlu0 %746
        %vm748 = vcmask 64512
        %v750 = vsel %vm748, %v744, 0
        %v753 = vsel %vm748, %v747, 0
        %755 = vmatprep.subr.bf16.mxu0 0
        %756 = vmatpush1.bf16.xpose.msra.mxu0 %v753
        %757 = vmatprep.subr.bf16.mxu0 0
        %758 = vmatpush1.bf16.xpose.msra.mxu0 0
        %759 = vmatprep.subr.bf16.mxu0 0
        %760 = vmatpush1.bf16.xpose.msra.mxu0 0
        %761 = vmatprep.subr.bf16.mxu0 0
        %762 = vmatpush1.bf16.xpose.msra.mxu0 0
        %763 = vmatprep.subr.bf16.mxu0 0
        %764 = vmatpush1.bf16.xpose.msra.mxu0 0
        %765 = vmatprep.subr.bf16.mxu0 0
        %766 = vmatpush1.bf16.xpose.msra.mxu0 0
        %767 = vmatprep.subr.bf16.mxu0 0
        %768 = vmatpush1.bf16.xpose.msra.mxu0 0
        %769 = vmatprep.subr.bf16.mxu0 0
        %770 = vmatpush1.bf16.xpose.msra.mxu0 0
        %771 = vmatprep.subr.bf16.mxu0 0
        %772 = vmatpush1.bf16.xpose.msra.mxu0 0
        %773 = vmatprep.subr.bf16.mxu0 0
        %774 = vmatpush1.bf16.xpose.msra.mxu0 0
        %775 = vmatprep.subr.bf16.mxu0 0
        %776 = vmatpush1.bf16.xpose.msra.mxu0 0
        %777 = vmatprep.subr.bf16.mxu0 0
        %778 = vmatpush1.bf16.xpose.msra.mxu0 0
        %779 = vmatprep.subr.bf16.mxu0 0
        %780 = vmatpush1.bf16.xpose.msra.mxu0 0
        %781 = vmatprep.subr.bf16.mxu0 0
        %782 = vmatpush1.bf16.xpose.msra.mxu0 0
        %783 = vmatprep.subr.bf16.mxu0 0
        %784 = vmatpush1.bf16.xpose.msra.mxu0 0
        %785 = vmatprep.subr.bf16.mxu0 0
        %786 = vmatpush1.bf16.xpose.msra.mxu0 0
        %787 = vmatprep.mubr.bf16.mxu0 0
        %788 = vmatmul.mubr.bf16.gmra.mrb[0].mxu0 %v750
        %v789 = vpop.f32.mrb[0].mxu0
        %v790 = vadd.f32 %v632, %v789
        %v791 = vpop.f32.mrb[0].mxu0
        %v792 = vpop.f32.mrb[0].mxu0
        %v793 = vpop.f32.mrb[0].mxu0
        %794 = vdwg.mxu0
        %v795 = vsel %vm748, %v790, -inf
        %796 = vmax.xlane.f32.xlu0 %v795
        %v797 = vpop.xlane.xlu0 %796
        %v798 = vsub.f32 %v790, %v797
        %v799 = vmul.f32 %v798, 1.442695
        %v800 = vpow.pop %v799
        %v801 = vsel %vm748, %v800, 0.0
        %802 = vadd.xlane.f32.xlu0 %v801
        %v803 = vpop.xlane.xlu0 %802
        %v804 = vrcp.pop %v803
        %v805 = vmul.f32 %v800, %v804
        %v806 = vpack.c.bf16 %v805, %v805
        %807 = vrot.lane.b32.xlu0 %v744, 64
        %v808 = vpop.permute.xlu0 %807
        %v810 = vsel %vm748, %v806, 0
        %vm812 = vcmask 1043456
        %v814 = vsel %vm812, %v808, 0
        %816 = vmatprep.subr.bf16.mxu0 0
        %817 = vmatpush1.bf16.msra.mxu0 %v814
        %818 = vmatprep.subr.bf16.mxu0 0
        %819 = vmatpush1.bf16.msra.mxu0 0
        %820 = vmatprep.subr.bf16.mxu0 0
        %821 = vmatpush1.bf16.msra.mxu0 0
        %822 = vmatprep.subr.bf16.mxu0 0
        %823 = vmatpush1.bf16.msra.mxu0 0
        %824 = vmatprep.subr.bf16.mxu0 0
        %825 = vmatpush1.bf16.msra.mxu0 0
        %826 = vmatprep.subr.bf16.mxu0 0
        %827 = vmatpush1.bf16.msra.mxu0 0
        %828 = vmatprep.subr.bf16.mxu0 0
        %829 = vmatpush1.bf16.msra.mxu0 0
        %830 = vmatprep.subr.bf16.mxu0 0
        %831 = vmatpush1.bf16.msra.mxu0 0
        %832 = vmatprep.subr.bf16.mxu0 0
        %833 = vmatpush1.bf16.msra.mxu0 0
        %834 = vmatprep.subr.bf16.mxu0 0
        %835 = vmatpush1.bf16.msra.mxu0 0
        %836 = vmatprep.subr.bf16.mxu0 0
        %837 = vmatpush1.bf16.msra.mxu0 0
        %838 = vmatprep.subr.bf16.mxu0 0
        %839 = vmatpush1.bf16.msra.mxu0 0
        %840 = vmatprep.subr.bf16.mxu0 0
        %841 = vmatpush1.bf16.msra.mxu0 0
        %842 = vmatprep.subr.bf16.mxu0 0
        %843 = vmatpush1.bf16.msra.mxu0 0
        %844 = vmatprep.subr.bf16.mxu0 0
        %845 = vmatpush1.bf16.msra.mxu0 0
        %846 = vmatprep.subr.bf16.mxu0 0
        %847 = vmatpush1.bf16.msra.mxu0 0
        %848 = vmatprep.mubr.bf16.mxu0 0
        %849 = vmatmul.mubr.bf16.gmra.mrb[0].mxu0 %v810
        %v850 = vpop.f32.mrb[0].mxu0
        %v851 = vadd.f32 0.0, %v850
        %v852 = vpop.f32.mrb[0].mxu0
        %v853 = vpop.f32.mrb[0].mxu0
        %v854 = vpop.f32.mrb[0].mxu0
        %855 = vdwg.mxu0
        %856 = vst.msk [vmem:[#allocation3] sm:$0xff] %vm748, %v851
        %857 = vrot.lane.b32.xlu0 %v744, 120
        %v858 = vpop.permute.xlu0 %857
        %859 = vrot.lane.b32.xlu0 %v744, 88
        %v860 = vpop.permute.xlu0 %859
        %v862 = vsel %vm748, %v858, 0
        %v865 = vsel %vm748, %v860, 0
        %867 = vmatprep.subr.bf16.mxu0 0
        %868 = vmatpush1.bf16.xpose.msra.mxu0 %v865
        %869 = vmatprep.subr.bf16.mxu0 0
        %870 = vmatpush1.bf16.xpose.msra.mxu0 0
        %871 = vmatprep.subr.bf16.mxu0 0
        %872 = vmatpush1.bf16.xpose.msra.mxu0 0
        %873 = vmatprep.subr.bf16.mxu0 0
        %874 = vmatpush1.bf16.xpose.msra.mxu0 0
        %875 = vmatprep.subr.bf16.mxu0 0
        %876 = vmatpush1.bf16.xpose.msra.mxu0 0
        %877 = vmatprep.subr.bf16.mxu0 0
        %878 = vmatpush1.bf16.xpose.msra.mxu0 0
        %879 = vmatprep.subr.bf16.mxu0 0
        %880 = vmatpush1.bf16.xpose.msra.mxu0 0
        %881 = vmatprep.subr.bf16.mxu0 0
        %882 = vmatpush1.bf16.xpose.msra.mxu0 0
        %883 = vmatprep.subr.bf16.mxu0 0
        %884 = vmatpush1.bf16.xpose.msra.mxu0 0
        %885 = vmatprep.subr.bf16.mxu0 0
        %886 = vmatpush1.bf16.xpose.msra.mxu0 0
        %887 = vmatprep.subr.bf16.mxu0 0
        %888 = vmatpush1.bf16.xpose.msra.mxu0 0
        %889 = vmatprep.subr.bf16.mxu0 0
        %890 = vmatpush1.bf16.xpose.msra.mxu0 0
        %891 = vmatprep.subr.bf16.mxu0 0
        %892 = vmatpush1.bf16.xpose.msra.mxu0 0
        %893 = vmatprep.subr.bf16.mxu0 0
        %894 = vmatpush1.bf16.xpose.msra.mxu0 0
        %895 = vmatprep.subr.bf16.mxu0 0
        %896 = vmatpush1.bf16.xpose.msra.mxu0 0
        %897 = vmatprep.subr.bf16.mxu0 0
        %898 = vmatpush1.bf16.xpose.msra.mxu0 0
        %899 = vmatprep.mubr.bf16.mxu0 0
        %900 = vmatmul.mubr.bf16.gmra.mrb[0].mxu0 %v862
        %v901 = vpop.f32.mrb[0].mxu0
        %v902 = vadd.f32 %v632, %v901
        %v903 = vpop.f32.mrb[0].mxu0
        %v904 = vpop.f32.mrb[0].mxu0
        %v905 = vpop.f32.mrb[0].mxu0
        %906 = vdwg.mxu0
        %v907 = vsel %vm748, %v902, -inf
        %908 = vmax.xlane.f32.xlu0 %v907
        %v909 = vpop.xlane.xlu0 %908
        %v910 = vsub.f32 %v902, %v909
        %v911 = vmul.f32 %v910, 1.442695
        %v912 = vpow.pop %v911
        %v913 = vsel %vm748, %v912, 0.0
        %914 = vadd.xlane.f32.xlu0 %v913
        %v915 = vpop.xlane.xlu0 %914
        %v916 = vrcp.pop %v915
        %v917 = vmul.f32 %v912, %v916
        %v918 = vpack.c.bf16 %v917, %v917
        %919 = vrot.lane.b32.xlu0 %v744, 56
        %v920 = vpop.permute.xlu0 %919
        %v922 = vsel %vm748, %v918, 0
        %v925 = vsel %vm812, %v920, 0
        %927 = vmatprep.subr.bf16.mxu0 0
        %928 = vmatpush1.bf16.msra.mxu0 %v925
        %929 = vmatprep.subr.bf16.mxu0 0
        %930 = vmatpush1.bf16.msra.mxu0 0
        %931 = vmatprep.subr.bf16.mxu0 0
        %932 = vmatpush1.bf16.msra.mxu0 0
        %933 = vmatprep.subr.bf16.mxu0 0
        %934 = vmatpush1.bf16.msra.mxu0 0
        %935 = vmatprep.subr.bf16.mxu0 0
        %936 = vmatpush1.bf16.msra.mxu0 0
        %937 = vmatprep.subr.bf16.mxu0 0
        %938 = vmatpush1.bf16.msra.mxu0 0
        %939 = vmatprep.subr.bf16.mxu0 0
        %940 = vmatpush1.bf16.msra.mxu0 0
        %941 = vmatprep.subr.bf16.mxu0 0
        %942 = vmatpush1.bf16.msra.mxu0 0
        %943 = vmatprep.subr.bf16.mxu0 0
        %944 = vmatpush1.bf16.msra.mxu0 0
        %945 = vmatprep.subr.bf16.mxu0 0
        %946 = vmatpush1.bf16.msra.mxu0 0
        %947 = vmatprep.subr.bf16.mxu0 0
        %948 = vmatpush1.bf16.msra.mxu0 0
        %949 = vmatprep.subr.bf16.mxu0 0
        %950 = vmatpush1.bf16.msra.mxu0 0
        %951 = vmatprep.subr.bf16.mxu0 0
        %952 = vmatpush1.bf16.msra.mxu0 0
        %953 = vmatprep.subr.bf16.mxu0 0
        %954 = vmatpush1.bf16.msra.mxu0 0
        %955 = vmatprep.subr.bf16.mxu0 0
        %956 = vmatpush1.bf16.msra.mxu0 0
        %957 = vmatprep.subr.bf16.mxu0 0
        %958 = vmatpush1.bf16.msra.mxu0 0
        %959 = vmatprep.mubr.bf16.mxu0 0
        %960 = vmatmul.mubr.bf16.gmra.mrb[0].mxu0 %v922
        %v961 = vpop.f32.mrb[0].mxu0
        %v962 = vadd.f32 0.0, %v961
        %v963 = vpop.f32.mrb[0].mxu0
        %v964 = vpop.f32.mrb[0].mxu0
        %v965 = vpop.f32.mrb[0].mxu0
        %966 = vdwg.mxu0
        %968 = vrot.lane.b32.xlu0 %v962, 8
        %v969 = vpop.permute.xlu0 %968
        %vm971 = vcmask 130112
        %972 = vst.msk [vmem:[#allocation3] sm:$0xff] %vm971, %v969
        %973 = vrot.lane.b32.xlu0 %v744, 112
        %v974 = vpop.permute.xlu0 %973
        %975 = vrot.lane.b32.xlu0 %v744, 80
        %v976 = vpop.permute.xlu0 %975
        %v978 = vsel %vm748, %v974, 0
        %v981 = vsel %vm748, %v976, 0
        %983 = vmatprep.subr.bf16.mxu0 0
        %984 = vmatpush1.bf16.xpose.msra.mxu0 %v981
        %985 = vmatprep.subr.bf16.mxu0 0
        %986 = vmatpush1.bf16.xpose.msra.mxu0 0
        %987 = vmatprep.subr.bf16.mxu0 0
        %988 = vmatpush1.bf16.xpose.msra.mxu0 0
        %989 = vmatprep.subr.bf16.mxu0 0
        %990 = vmatpush1.bf16.xpose.msra.mxu0 0
        %991 = vmatprep.subr.bf16.mxu0 0
        %992 = vmatpush1.bf16.xpose.msra.mxu0 0
        %993 = vmatprep.subr.bf16.mxu0 0
        %994 = vmatpush1.bf16.xpose.msra.mxu0 0
        %995 = vmatprep.subr.bf16.mxu0 0
        %996 = vmatpush1.bf16.xpose.msra.mxu0 0
        %997 = vmatprep.subr.bf16.mxu0 0
        %998 = vmatpush1.bf16.xpose.msra.mxu0 0
        %999 = vmatprep.subr.bf16.mxu0 0
        %1000 = vmatpush1.bf16.xpose.msra.mxu0 0
        %1001 = vmatprep.subr.bf16.mxu0 0
        %1002 = vmatpush1.bf16.xpose.msra.mxu0 0
        %1003 = vmatprep.subr.bf16.mxu0 0
        %1004 = vmatpush1.bf16.xpose.msra.mxu0 0
        %1005 = vmatprep.subr.bf16.mxu0 0
        %1006 = vmatpush1.bf16.xpose.msra.mxu0 0
        %1007 = vmatprep.subr.bf16.mxu0 0
        %1008 = vmatpush1.bf16.xpose.msra.mxu0 0
        %1009 = vmatprep.subr.bf16.mxu0 0
        %1010 = vmatpush1.bf16.xpose.msra.mxu0 0
        %1011 = vmatprep.subr.bf16.mxu0 0
        %1012 = vmatpush1.bf16.xpose.msra.mxu0 0
        %1013 = vmatprep.subr.bf16.mxu0 0
        %1014 = vmatpush1.bf16.xpose.msra.mxu0 0
        %1015 = vmatprep.mubr.bf16.mxu0 0
        %1016 = vmatmul.mubr.bf16.gmra.mrb[0].mxu0 %v978
        %v1017 = vpop.f32.mrb[0].mxu0
        %v1018 = vadd.f32 %v632, %v1017
        %v1019 = vpop.f32.mrb[0].mxu0
        %v1020 = vpop.f32.mrb[0].mxu0
        %v1021 = vpop.f32.mrb[0].mxu0
        %1022 = vdwg.mxu0
        %v1023 = vsel %vm748, %v1018, -inf
        %1024 = vmax.xlane.f32.xlu0 %v1023
        %v1025 = vpop.xlane.xlu0 %1024
        %v1026 = vsub.f32 %v1018, %v1025
        %v1027 = vmul.f32 %v1026, 1.442695
        %v1028 = vpow.pop %v1027
        %v1029 = vsel %vm748, %v1028, 0.0
        %1030 = vadd.xlane.f32.xlu0 %v1029
        %v1031 = vpop.xlane.xlu0 %1030
        %v1032 = vrcp.pop %v1031
        %v1033 = vmul.f32 %v1028, %v1032
        %v1034 = vpack.c.bf16 %v1033, %v1033
        %1035 = vrot.lane.b32.xlu0 %v744, 48
        %v1036 = vpop.permute.xlu0 %1035
        %v1038 = vsel %vm748, %v1034, 0
        %v1041 = vsel %vm812, %v1036, 0
        %1043 = vmatprep.subr.bf16.mxu0 0
        %1044 = vmatpush1.bf16.msra.mxu0 %v1041
        %1045 = vmatprep.subr.bf16.mxu0 0
        %1046 = vmatpush1.bf16.msra.mxu0 0
        %1047 = vmatprep.subr.bf16.mxu0 0
        %1048 = vmatpush1.bf16.msra.mxu0 0
        %1049 = vmatprep.subr.bf16.mxu0 0
        %1050 = vmatpush1.bf16.msra.mxu0 0
        %1051 = vmatprep.subr.bf16.mxu0 0
        %1052 = vmatpush1.bf16.msra.mxu0 0
        %1053 = vmatprep.subr.bf16.mxu0 0
        %1054 = vmatpush1.bf16.msra.mxu0 0
        %1055 = vmatprep.subr.bf16.mxu0 0
        %1056 = vmatpush1.bf16.msra.mxu0 0
        %1057 = vmatprep.subr.bf16.mxu0 0
        %1058 = vmatpush1.bf16.msra.mxu0 0
        %1059 = vmatprep.subr.bf16.mxu0 0
        %1060 = vmatpush1.bf16.msra.mxu0 0
        %1061 = vmatprep.subr.bf16.mxu0 0
        %1062 = vmatpush1.bf16.msra.mxu0 0
        %1063 = vmatprep.subr.bf16.mxu0 0
        %1064 = vmatpush1.bf16.msra.mxu0 0
        %1065 = vmatprep.subr.bf16.mxu0 0
        %1066 = vmatpush1.bf16.msra.mxu0 0
        %1067 = vmatprep.subr.bf16.mxu0 0
        %1068 = vmatpush1.bf16.msra.mxu0 0
        %1069 = vmatprep.subr.bf16.mxu0 0
        %1070 = vmatpush1.bf16.msra.mxu0 0
        %1071 = vmatprep.subr.bf16.mxu0 0
        %1072 = vmatpush1.bf16.msra.mxu0 0
        %1073 = vmatprep.subr.bf16.mxu0 0
        %1074 = vmatpush1.bf16.msra.mxu0 0
        %1075 = vmatprep.mubr.bf16.mxu0 0
        %1076 = vmatmul.mubr.bf16.gmra.mrb[0].mxu0 %v1038
        %v1077 = vpop.f32.mrb[0].mxu0
        %v1078 = vadd.f32 0.0, %v1077
        %v1079 = vpop.f32.mrb[0].mxu0
        %v1080 = vpop.f32.mrb[0].mxu0
        %v1081 = vpop.f32.mrb[0].mxu0
        %1082 = vdwg.mxu0
        %1084 = vrot.lane.b32.xlu0 %v1078, 16
        %v1085 = vpop.permute.xlu0 %1084
        %vm1087 = vcmask 195712
        %1088 = vst.msk [vmem:[#allocation3] sm:$0xff] %vm1087, %v1085
        %1089 = vrot.lane.b32.xlu0 %v744, 104
        %v1090 = vpop.permute.xlu0 %1089
        %1091 = vrot.lane.b32.xlu0 %v744, 72
        %v1092 = vpop.permute.xlu0 %1091
        %v1094 = vsel %vm748, %v1090, 0
        %v1097 = vsel %vm748, %v1092, 0
        %1099 = vmatprep.subr.bf16.mxu0 0
        %1100 = vmatpush1.bf16.xpose.msra.mxu0 %v1097
        %1101 = vmatprep.subr.bf16.mxu0 0
        %1102 = vmatpush1.bf16.xpose.msra.mxu0 0
        %1103 = vmatprep.subr.bf16.mxu0 0
        %1104 = vmatpush1.bf16.xpose.msra.mxu0 0
        %1105 = vmatprep.subr.bf16.mxu0 0
        %1106 = vmatpush1.bf16.xpose.msra.mxu0 0
        %1107 = vmatprep.subr.bf16.mxu0 0
        %1108 = vmatpush1.bf16.xpose.msra.mxu0 0
        %1109 = vmatprep.subr.bf16.mxu0 0
        %1110 = vmatpush1.bf16.xpose.msra.mxu0 0
        %1111 = vmatprep.subr.bf16.mxu0 0
        %1112 = vmatpush1.bf16.xpose.msra.mxu0 0
        %1113 = vmatprep.subr.bf16.mxu0 0
        %1114 = vmatpush1.bf16.xpose.msra.mxu0 0
        %1115 = vmatprep.subr.bf16.mxu0 0
        %1116 = vmatpush1.bf16.xpose.msra.mxu0 0
        %1117 = vmatprep.subr.bf16.mxu0 0
        %1118 = vmatpush1.bf16.xpose.msra.mxu0 0
        %1119 = vmatprep.subr.bf16.mxu0 0
        %1120 = vmatpush1.bf16.xpose.msra.mxu0 0
        %1121 = vmatprep.subr.bf16.mxu0 0
        %1122 = vmatpush1.bf16.xpose.msra.mxu0 0
        %1123 = vmatprep.subr.bf16.mxu0 0
        %1124 = vmatpush1.bf16.xpose.msra.mxu0 0
        %1125 = vmatprep.subr.bf16.mxu0 0
        %1126 = vmatpush1.bf16.xpose.msra.mxu0 0
        %1127 = vmatprep.subr.bf16.mxu0 0
        %1128 = vmatpush1.bf16.xpose.msra.mxu0 0
        %1129 = vmatprep.subr.bf16.mxu0 0
        %1130 = vmatpush1.bf16.xpose.msra.mxu0 0
        %1131 = vmatprep.mubr.bf16.mxu0 0
        %1132 = vmatmul.mubr.bf16.gmra.mrb[0].mxu0 %v1094
        %v1133 = vpop.f32.mrb[0].mxu0
        %v1134 = vadd.f32 %v632, %v1133
        %v1135 = vpop.f32.mrb[0].mxu0
        %v1136 = vpop.f32.mrb[0].mxu0
        %v1137 = vpop.f32.mrb[0].mxu0
        %1138 = vdwg.mxu0
        %v1139 = vsel %vm748, %v1134, -inf
        %1140 = vmax.xlane.f32.xlu0 %v1139
        %v1141 = vpop.xlane.xlu0 %1140
        %v1142 = vsub.f32 %v1134, %v1141
        %v1143 = vmul.f32 %v1142, 1.442695
        %v1144 = vpow.pop %v1143
        %v1145 = vsel %vm748, %v1144, 0.0
        %1146 = vadd.xlane.f32.xlu0 %v1145
        %v1147 = vpop.xlane.xlu0 %1146
        %v1148 = vrcp.pop %v1147
        %v1149 = vmul.f32 %v1144, %v1148
        %v1150 = vpack.c.bf16 %v1149, %v1149
        %1151 = vrot.lane.b32.xlu0 %v744, 40
        %v1152 = vpop.permute.xlu0 %1151
        %v1154 = vsel %vm748, %v1150, 0
        %v1157 = vsel %vm812, %v1152, 0
        %1159 = vmatprep.subr.bf16.mxu0 0
        %1160 = vmatpush1.bf16.msra.mxu0 %v1157
        %1161 = vmatprep.subr.bf16.mxu0 0
        %1162 = vmatpush1.bf16.msra.mxu0 0
        %1163 = vmatprep.subr.bf16.mxu0 0
        %1164 = vmatpush1.bf16.msra.mxu0 0
        %1165 = vmatprep.subr.bf16.mxu0 0
        %1166 = vmatpush1.bf16.msra.mxu0 0
        %1167 = vmatprep.subr.bf16.mxu0 0
        %1168 = vmatpush1.bf16.msra.mxu0 0
        %1169 = vmatprep.subr.bf16.mxu0 0
        %1170 = vmatpush1.bf16.msra.mxu0 0
        %1171 = vmatprep.subr.bf16.mxu0 0
        %1172 = vmatpush1.bf16.msra.mxu0 0
        %1173 = vmatprep.subr.bf16.mxu0 0
        %1174 = vmatpush1.bf16.msra.mxu0 0
        %1175 = vmatprep.subr.bf16.mxu0 0
        %1176 = vmatpush1.bf16.msra.mxu0 0
        %1177 = vmatprep.subr.bf16.mxu0 0
        %1178 = vmatpush1.bf16.msra.mxu0 0
        %1179 = vmatprep.subr.bf16.mxu0 0
        %1180 = vmatpush1.bf16.msra.mxu0 0
        %1181 = vmatprep.subr.bf16.mxu0 0
        %1182 = vmatpush1.bf16.msra.mxu0 0
        %1183 = vmatprep.subr.bf16.mxu0 0
        %1184 = vmatpush1.bf16.msra.mxu0 0
        %1185 = vmatprep.subr.bf16.mxu0 0
        %1186 = vmatpush1.bf16.msra.mxu0 0
        %1187 = vmatprep.subr.bf16.mxu0 0
        %1188 = vmatpush1.bf16.msra.mxu0 0
        %1189 = vmatprep.subr.bf16.mxu0 0
        %1190 = vmatpush1.bf16.msra.mxu0 0
        %1191 = vmatprep.mubr.bf16.mxu0 0
        %1192 = vmatmul.mubr.bf16.gmra.mrb[0].mxu0 %v1154
        %v1193 = vpop.f32.mrb[0].mxu0
        %v1194 = vadd.f32 0.0, %v1193
        %v1195 = vpop.f32.mrb[0].mxu0
        %v1196 = vpop.f32.mrb[0].mxu0
        %v1197 = vpop.f32.mrb[0].mxu0
        %1198 = vdwg.mxu0
        %1200 = vrot.lane.b32.xlu0 %v1194, 24
        %v1201 = vpop.permute.xlu0 %1200
        %vm1203 = vcmask 261312
        %1204 = vst.msk [vmem:[#allocation3] sm:$0xff] %vm1203, %v1201
        %v1205 = vpack.c.bf16 %v741, %v741
        %1207 = vrot.lane.b32.xlu0 %v1205, 96
        %v1208 = vpop.permute.xlu0 %1207
        %v1210 = vsel %vm748, %v1205, 0
        %v1213 = vsel %vm748, %v1208, 0
        %1215 = vmatprep.subr.bf16.mxu0 0
        %1216 = vmatpush1.bf16.xpose.msra.mxu0 %v1213
        %1217 = vmatprep.subr.bf16.mxu0 0
        %1218 = vmatpush1.bf16.xpose.msra.mxu0 0
        %1219 = vmatprep.subr.bf16.mxu0 0
        %1220 = vmatpush1.bf16.xpose.msra.mxu0 0
        %1221 = vmatprep.subr.bf16.mxu0 0
        %1222 = vmatpush1.bf16.xpose.msra.mxu0 0
        %1223 = vmatprep.subr.bf16.mxu0 0
        %1224 = vmatpush1.bf16.xpose.msra.mxu0 0
        %1225 = vmatprep.subr.bf16.mxu0 0
        %1226 = vmatpush1.bf16.xpose.msra.mxu0 0
        %1227 = vmatprep.subr.bf16.mxu0 0
        %1228 = vmatpush1.bf16.xpose.msra.mxu0 0
        %1229 = vmatprep.subr.bf16.mxu0 0
        %1230 = vmatpush1.bf16.xpose.msra.mxu0 0
        %1231 = vmatprep.subr.bf16.mxu0 0
        %1232 = vmatpush1.bf16.xpose.msra.mxu0 0
        %1233 = vmatprep.subr.bf16.mxu0 0
        %1234 = vmatpush1.bf16.xpose.msra.mxu0 0
        %1235 = vmatprep.subr.bf16.mxu0 0
        %1236 = vmatpush1.bf16.xpose.msra.mxu0 0
        %1237 = vmatprep.subr.bf16.mxu0 0
        %1238 = vmatpush1.bf16.xpose.msra.mxu0 0
        %1239 = vmatprep.subr.bf16.mxu0 0
        %1240 = vmatpush1.bf16.xpose.msra.mxu0 0
        %1241 = vmatprep.subr.bf16.mxu0 0
        %1242 = vmatpush1.bf16.xpose.msra.mxu0 0
        %1243 = vmatprep.subr.bf16.mxu0 0
        %1244 = vmatpush1.bf16.xpose.msra.mxu0 0
        %1245 = vmatprep.subr.bf16.mxu0 0
        %1246 = vmatpush1.bf16.xpose.msra.mxu0 0
        %1247 = vmatprep.mubr.bf16.mxu0 0
        %1248 = vmatmul.mubr.bf16.gmra.mrb[0].mxu0 %v1210
        %v1249 = vpop.f32.mrb[0].mxu0
        %v1250 = vadd.f32 %v632, %v1249
        %v1251 = vpop.f32.mrb[0].mxu0
        %v1252 = vpop.f32.mrb[0].mxu0
        %v1253 = vpop.f32.mrb[0].mxu0
        %1254 = vdwg.mxu0
        %v1255 = vsel %vm748, %v1250, -inf
        %1256 = vmax.xlane.f32.xlu0 %v1255
        %v1257 = vpop.xlane.xlu0 %1256
        %v1258 = vsub.f32 %v1250, %v1257
        %v1259 = vmul.f32 %v1258, 1.442695
        %v1260 = vpow.pop %v1259
        %v1261 = vsel %vm748, %v1260, 0.0
        %1262 = vadd.xlane.f32.xlu0 %v1261
        %v1263 = vpop.xlane.xlu0 %1262
        %v1264 = vrcp.pop %v1263
        %v1265 = vmul.f32 %v1260, %v1264
        %v1266 = vpack.c.bf16 %v1265, %v1265
        %1267 = vrot.lane.b32.xlu0 %v1205, 64
        %v1268 = vpop.permute.xlu0 %1267
        %v1270 = vsel %vm748, %v1266, 0
        %v1273 = vsel %vm812, %v1268, 0
        %1275 = vmatprep.subr.bf16.mxu0 0
        %1276 = vmatpush1.bf16.msra.mxu0 %v1273
        %1277 = vmatprep.subr.bf16.mxu0 0
        %1278 = vmatpush1.bf16.msra.mxu0 0
        %1279 = vmatprep.subr.bf16.mxu0 0
        %1280 = vmatpush1.bf16.msra.mxu0 0
        %1281 = vmatprep.subr.bf16.mxu0 0
        %1282 = vmatpush1.bf16.msra.mxu0 0
        %1283 = vmatprep.subr.bf16.mxu0 0
        %1284 = vmatpush1.bf16.msra.mxu0 0
        %1285 = vmatprep.subr.bf16.mxu0 0
        %1286 = vmatpush1.bf16.msra.mxu0 0
        %1287 = vmatprep.subr.bf16.mxu0 0
        %1288 = vmatpush1.bf16.msra.mxu0 0
        %1289 = vmatprep.subr.bf16.mxu0 0
        %1290 = vmatpush1.bf16.msra.mxu0 0
        %1291 = vmatprep.subr.bf16.mxu0 0
        %1292 = vmatpush1.bf16.msra.mxu0 0
        %1293 = vmatprep.subr.bf16.mxu0 0
        %1294 = vmatpush1.bf16.msra.mxu0 0
        %1295 = vmatprep.subr.bf16.mxu0 0
        %1296 = vmatpush1.bf16.msra.mxu0 0
        %1297 = vmatprep.subr.bf16.mxu0 0
        %1298 = vmatpush1.bf16.msra.mxu0 0
        %1299 = vmatprep.subr.bf16.mxu0 0
        %1300 = vmatpush1.bf16.msra.mxu0 0
        %1301 = vmatprep.subr.bf16.mxu0 0
        %1302 = vmatpush1.bf16.msra.mxu0 0
        %1303 = vmatprep.subr.bf16.mxu0 0
        %1304 = vmatpush1.bf16.msra.mxu0 0
        %1305 = vmatprep.subr.bf16.mxu0 0
        %1306 = vmatpush1.bf16.msra.mxu0 0
        %1307 = vmatprep.mubr.bf16.mxu0 0
        %1308 = vmatmul.mubr.bf16.gmra.mrb[0].mxu0 %v1270
        %v1309 = vpop.f32.mrb[0].mxu0
        %v1310 = vadd.f32 0.0, %v1309
        %v1311 = vpop.f32.mrb[0].mxu0
        %v1312 = vpop.f32.mrb[0].mxu0
        %v1313 = vpop.f32.mrb[0].mxu0
        %1314 = vdwg.mxu0
        %1315 = vst.msk [vmem:[#allocation3 + $0x8] sm:$0xff] %vm748, %v1310
        %1316 = vrot.lane.b32.xlu0 %v1205, 120
        %v1317 = vpop.permute.xlu0 %1316
        %1318 = vrot.lane.b32.xlu0 %v1205, 88
        %v1319 = vpop.permute.xlu0 %1318
        %v1321 = vsel %vm748, %v1317, 0
        %v1324 = vsel %vm748, %v1319, 0
        %1326 = vmatprep.subr.bf16.mxu0 0
        %1327 = vmatpush1.bf16.xpose.msra.mxu0 %v1324
        %1328 = vmatprep.subr.bf16.mxu0 0
        %1329 = vmatpush1.bf16.xpose.msra.mxu0 0
        %1330 = vmatprep.subr.bf16.mxu0 0
        %1331 = vmatpush1.bf16.xpose.msra.mxu0 0
        %1332 = vmatprep.subr.bf16.mxu0 0
        %1333 = vmatpush1.bf16.xpose.msra.mxu0 0
        %1334 = vmatprep.subr.bf16.mxu0 0
        %1335 = vmatpush1.bf16.xpose.msra.mxu0 0
        %1336 = vmatprep.subr.bf16.mxu0 0
        %1337 = vmatpush1.bf16.xpose.msra.mxu0 0
        %1338 = vmatprep.subr.bf16.mxu0 0
        %1339 = vmatpush1.bf16.xpose.msra.mxu0 0
        %1340 = vmatprep.subr.bf16.mxu0 0
        %1341 = vmatpush1.bf16.xpose.msra.mxu0 0
        %1342 = vmatprep.subr.bf16.mxu0 0
        %1343 = vmatpush1.bf16.xpose.msra.mxu0 0
        %1344 = vmatprep.subr.bf16.mxu0 0
        %1345 = vmatpush1.bf16.xpose.msra.mxu0 0
        %1346 = vmatprep.subr.bf16.mxu0 0
        %1347 = vmatpush1.bf16.xpose.msra.mxu0 0
        %1348 = vmatprep.subr.bf16.mxu0 0
        %1349 = vmatpush1.bf16.xpose.msra.mxu0 0
        %1350 = vmatprep.subr.bf16.mxu0 0
        %1351 = vmatpush1.bf16.xpose.msra.mxu0 0
        %1352 = vmatprep.subr.bf16.mxu0 0
        %1353 = vmatpush1.bf16.xpose.msra.mxu0 0
        %1354 = vmatprep.subr.bf16.mxu0 0
        %1355 = vmatpush1.bf16.xpose.msra.mxu0 0
        %1356 = vmatprep.subr.bf16.mxu0 0
        %1357 = vmatpush1.bf16.xpose.msra.mxu0 0
        %1358 = vmatprep.mubr.bf16.mxu0 0
        %1359 = vmatmul.mubr.bf16.gmra.mrb[0].mxu0 %v1321
        %v1360 = vpop.f32.mrb[0].mxu0
        %v1361 = vadd.f32 %v632, %v1360
        %v1362 = vpop.f32.mrb[0].mxu0
        %v1363 = vpop.f32.mrb[0].mxu0
        %v1364 = vpop.f32.mrb[0].mxu0
        %1365 = vdwg.mxu0
        %v1366 = vsel %vm748, %v1361, -inf
        %1367 = vmax.xlane.f32.xlu0 %v1366
        %v1368 = vpop.xlane.xlu0 %1367
        %v1369 = vsub.f32 %v1361, %v1368
        %v1370 = vmul.f32 %v1369, 1.442695
        %v1371 = vpow.pop %v1370
        %v1372 = vsel %vm748, %v1371, 0.0
        %1373 = vadd.xlane.f32.xlu0 %v1372
        %v1374 = vpop.xlane.xlu0 %1373
        %v1375 = vrcp.pop %v1374
        %v1376 = vmul.f32 %v1371, %v1375
        %v1377 = vpack.c.bf16 %v1376, %v1376
        %1378 = vrot.lane.b32.xlu0 %v1205, 56
        %v1379 = vpop.permute.xlu0 %1378
        %v1381 = vsel %vm748, %v1377, 0
        %v1384 = vsel %vm812, %v1379, 0
        %1386 = vmatprep.subr.bf16.mxu0 0
        %1387 = vmatpush1.bf16.msra.mxu0 %v1384
        %1388 = vmatprep.subr.bf16.mxu0 0
        %1389 = vmatpush1.bf16.msra.mxu0 0
        %1390 = vmatprep.subr.bf16.mxu0 0
        %1391 = vmatpush1.bf16.msra.mxu0 0
        %1392 = vmatprep.subr.bf16.mxu0 0
        %1393 = vmatpush1.bf16.msra.mxu0 0
        %1394 = vmatprep.subr.bf16.mxu0 0
        %1395 = vmatpush1.bf16.msra.mxu0 0
        %1396 = vmatprep.subr.bf16.mxu0 0
        %1397 = vmatpush1.bf16.msra.mxu0 0
        %1398 = vmatprep.subr.bf16.mxu0 0
        %1399 = vmatpush1.bf16.msra.mxu0 0
        %1400 = vmatprep.subr.bf16.mxu0 0
        %1401 = vmatpush1.bf16.msra.mxu0 0
        %1402 = vmatprep.subr.bf16.mxu0 0
        %1403 = vmatpush1.bf16.msra.mxu0 0
        %1404 = vmatprep.subr.bf16.mxu0 0
        %1405 = vmatpush1.bf16.msra.mxu0 0
        %1406 = vmatprep.subr.bf16.mxu0 0
        %1407 = vmatpush1.bf16.msra.mxu0 0
        %1408 = vmatprep.subr.bf16.mxu0 0
        %1409 = vmatpush1.bf16.msra.mxu0 0
        %1410 = vmatprep.subr.bf16.mxu0 0
        %1411 = vmatpush1.bf16.msra.mxu0 0
        %1412 = vmatprep.subr.bf16.mxu0 0
        %1413 = vmatpush1.bf16.msra.mxu0 0
        %1414 = vmatprep.subr.bf16.mxu0 0
        %1415 = vmatpush1.bf16.msra.mxu0 0
        %1416 = vmatprep.subr.bf16.mxu0 0
        %1417 = vmatpush1.bf16.msra.mxu0 0
        %1418 = vmatprep.mubr.bf16.mxu0 0
        %1419 = vmatmul.mubr.bf16.gmra.mrb[0].mxu0 %v1381
        %v1420 = vpop.f32.mrb[0].mxu0
        %v1421 = vadd.f32 0.0, %v1420
        %v1422 = vpop.f32.mrb[0].mxu0
        %v1423 = vpop.f32.mrb[0].mxu0
        %v1424 = vpop.f32.mrb[0].mxu0
        %1425 = vdwg.mxu0
        %1427 = vrot.lane.b32.xlu0 %v1421, 8
        %v1428 = vpop.permute.xlu0 %1427
        %1430 = vst.msk [vmem:[#allocation3 + $0x8] sm:$0xff] %vm971, %v1428
        %1431 = vrot.lane.b32.xlu0 %v1205, 112
        %v1432 = vpop.permute.xlu0 %1431
        %1433 = vrot.lane.b32.xlu0 %v1205, 80
        %v1434 = vpop.permute.xlu0 %1433
        %v1436 = vsel %vm748, %v1432, 0
        %v1439 = vsel %vm748, %v1434, 0
        %1441 = vmatprep.subr.bf16.mxu0 0
        %1442 = vmatpush1.bf16.xpose.msra.mxu0 %v1439
        %1443 = vmatprep.subr.bf16.mxu0 0
        %1444 = vmatpush1.bf16.xpose.msra.mxu0 0
        %1445 = vmatprep.subr.bf16.mxu0 0
        %1446 = vmatpush1.bf16.xpose.msra.mxu0 0
        %1447 = vmatprep.subr.bf16.mxu0 0
        %1448 = vmatpush1.bf16.xpose.msra.mxu0 0
        %1449 = vmatprep.subr.bf16.mxu0 0
        %1450 = vmatpush1.bf16.xpose.msra.mxu0 0
        %1451 = vmatprep.subr.bf16.mxu0 0
        %1452 = vmatpush1.bf16.xpose.msra.mxu0 0
        %1453 = vmatprep.subr.bf16.mxu0 0
        %1454 = vmatpush1.bf16.xpose.msra.mxu0 0
        %1455 = vmatprep.subr.bf16.mxu0 0
        %1456 = vmatpush1.bf16.xpose.msra.mxu0 0
        %1457 = vmatprep.subr.bf16.mxu0 0
        %1458 = vmatpush1.bf16.xpose.msra.mxu0 0
        %1459 = vmatprep.subr.bf16.mxu0 0
        %1460 = vmatpush1.bf16.xpose.msra.mxu0 0
        %1461 = vmatprep.subr.bf16.mxu0 0
        %1462 = vmatpush1.bf16.xpose.msra.mxu0 0
        %1463 = vmatprep.subr.bf16.mxu0 0
        %1464 = vmatpush1.bf16.xpose.msra.mxu0 0
        %1465 = vmatprep.subr.bf16.mxu0 0
        %1466 = vmatpush1.bf16.xpose.msra.mxu0 0
        %1467 = vmatprep.subr.bf16.mxu0 0
        %1468 = vmatpush1.bf16.xpose.msra.mxu0 0
        %1469 = vmatprep.subr.bf16.mxu0 0
        %1470 = vmatpush1.bf16.xpose.msra.mxu0 0
        %1471 = vmatprep.subr.bf16.mxu0 0
        %1472 = vmatpush1.bf16.xpose.msra.mxu0 0
        %1473 = vmatprep.mubr.bf16.mxu0 0
        %1474 = vmatmul.mubr.bf16.gmra.mrb[0].mxu0 %v1436
        %v1475 = vpop.f32.mrb[0].mxu0
        %v1476 = vadd.f32 %v632, %v1475
        %v1477 = vpop.f32.mrb[0].mxu0
        %v1478 = vpop.f32.mrb[0].mxu0
        %v1479 = vpop.f32.mrb[0].mxu0
        %1480 = vdwg.mxu0
        %v1481 = vsel %vm748, %v1476, -inf
        %1482 = vmax.xlane.f32.xlu0 %v1481
        %v1483 = vpop.xlane.xlu0 %1482
        %v1484 = vsub.f32 %v1476, %v1483
        %v1485 = vmul.f32 %v1484, 1.442695
        %v1486 = vpow.pop %v1485
        %v1487 = vsel %vm748, %v1486, 0.0
        %1488 = vadd.xlane.f32.xlu0 %v1487
        %v1489 = vpop.xlane.xlu0 %1488
        %v1490 = vrcp.pop %v1489
        %v1491 = vmul.f32 %v1486, %v1490
        %v1492 = vpack.c.bf16 %v1491, %v1491
        %1493 = vrot.lane.b32.xlu0 %v1205, 48
        %v1494 = vpop.permute.xlu0 %1493
        %v1496 = vsel %vm748, %v1492, 0
        %v1499 = vsel %vm812, %v1494, 0
        %1501 = vmatprep.subr.bf16.mxu0 0
        %1502 = vmatpush1.bf16.msra.mxu0 %v1499
        %1503 = vmatprep.subr.bf16.mxu0 0
        %1504 = vmatpush1.bf16.msra.mxu0 0
        %1505 = vmatprep.subr.bf16.mxu0 0
        %1506 = vmatpush1.bf16.msra.mxu0 0
        %1507 = vmatprep.subr.bf16.mxu0 0
        %1508 = vmatpush1.bf16.msra.mxu0 0
        %1509 = vmatprep.subr.bf16.mxu0 0
        %1510 = vmatpush1.bf16.msra.mxu0 0
        %1511 = vmatprep.subr.bf16.mxu0 0
        %1512 = vmatpush1.bf16.msra.mxu0 0
        %1513 = vmatprep.subr.bf16.mxu0 0
        %1514 = vmatpush1.bf16.msra.mxu0 0
        %1515 = vmatprep.subr.bf16.mxu0 0
        %1516 = vmatpush1.bf16.msra.mxu0 0
        %1517 = vmatprep.subr.bf16.mxu0 0
        %1518 = vmatpush1.bf16.msra.mxu0 0
        %1519 = vmatprep.subr.bf16.mxu0 0
        %1520 = vmatpush1.bf16.msra.mxu0 0
        %1521 = vmatprep.subr.bf16.mxu0 0
        %1522 = vmatpush1.bf16.msra.mxu0 0
        %1523 = vmatprep.subr.bf16.mxu0 0
        %1524 = vmatpush1.bf16.msra.mxu0 0
        %1525 = vmatprep.subr.bf16.mxu0 0
        %1526 = vmatpush1.bf16.msra.mxu0 0
        %1527 = vmatprep.subr.bf16.mxu0 0
        %1528 = vmatpush1.bf16.msra.mxu0 0
        %1529 = vmatprep.subr.bf16.mxu0 0
        %1530 = vmatpush1.bf16.msra.mxu0 0
        %1531 = vmatprep.subr.bf16.mxu0 0
        %1532 = vmatpush1.bf16.msra.mxu0 0
        %1533 = vmatprep.mubr.bf16.mxu0 0
        %1534 = vmatmul.mubr.bf16.gmra.mrb[0].mxu0 %v1496
        %v1535 = vpop.f32.mrb[0].mxu0
        %v1536 = vadd.f32 0.0, %v1535
        %v1537 = vpop.f32.mrb[0].mxu0
        %v1538 = vpop.f32.mrb[0].mxu0
        %v1539 = vpop.f32.mrb[0].mxu0
        %1540 = vdwg.mxu0
        %1542 = vrot.lane.b32.xlu0 %v1536, 16
        %v1543 = vpop.permute.xlu0 %1542
        %1545 = vst.msk [vmem:[#allocation3 + $0x8] sm:$0xff] %vm1087, %v1543
        %1546 = vrot.lane.b32.xlu0 %v1205, 104
        %v1547 = vpop.permute.xlu0 %1546
        %1548 = vrot.lane.b32.xlu0 %v1205, 72
        %v1549 = vpop.permute.xlu0 %1548
        %v1551 = vsel %vm748, %v1547, 0
        %v1554 = vsel %vm748, %v1549, 0
        %1556 = vmatprep.subr.bf16.mxu0 0
        %1557 = vmatpush1.bf16.xpose.msra.mxu0 %v1554
        %1558 = vmatprep.subr.bf16.mxu0 0
        %1559 = vmatpush1.bf16.xpose.msra.mxu0 0
        %1560 = vmatprep.subr.bf16.mxu0 0
        %1561 = vmatpush1.bf16.xpose.msra.mxu0 0
        %1562 = vmatprep.subr.bf16.mxu0 0
        %1563 = vmatpush1.bf16.xpose.msra.mxu0 0
        %1564 = vmatprep.subr.bf16.mxu0 0
        %1565 = vmatpush1.bf16.xpose.msra.mxu0 0
        %1566 = vmatprep.subr.bf16.mxu0 0
        %1567 = vmatpush1.bf16.xpose.msra.mxu0 0
        %1568 = vmatprep.subr.bf16.mxu0 0
        %1569 = vmatpush1.bf16.xpose.msra.mxu0 0
        %1570 = vmatprep.subr.bf16.mxu0 0
        %1571 = vmatpush1.bf16.xpose.msra.mxu0 0
        %1572 = vmatprep.subr.bf16.mxu0 0
        %1573 = vmatpush1.bf16.xpose.msra.mxu0 0
        %1574 = vmatprep.subr.bf16.mxu0 0
        %1575 = vmatpush1.bf16.xpose.msra.mxu0 0
        %1576 = vmatprep.subr.bf16.mxu0 0
        %1577 = vmatpush1.bf16.xpose.msra.mxu0 0
        %1578 = vmatprep.subr.bf16.mxu0 0
        %1579 = vmatpush1.bf16.xpose.msra.mxu0 0
        %1580 = vmatprep.subr.bf16.mxu0 0
        %1581 = vmatpush1.bf16.xpose.msra.mxu0 0
        %1582 = vmatprep.subr.bf16.mxu0 0
        %1583 = vmatpush1.bf16.xpose.msra.mxu0 0
        %1584 = vmatprep.subr.bf16.mxu0 0
        %1585 = vmatpush1.bf16.xpose.msra.mxu0 0
        %1586 = vmatprep.subr.bf16.mxu0 0
        %1587 = vmatpush1.bf16.xpose.msra.mxu0 0
        %1588 = vmatprep.mubr.bf16.mxu0 0
        %1589 = vmatmul.mubr.bf16.gmra.mrb[0].mxu0 %v1551
        %v1590 = vpop.f32.mrb[0].mxu0
        %v1591 = vadd.f32 %v632, %v1590
        %v1592 = vpop.f32.mrb[0].mxu0
        %v1593 = vpop.f32.mrb[0].mxu0
        %v1594 = vpop.f32.mrb[0].mxu0
        %1595 = vdwg.mxu0
        %v1596 = vsel %vm748, %v1591, -inf
        %1597 = vmax.xlane.f32.xlu0 %v1596
        %v1598 = vpop.xlane.xlu0 %1597
        %v1599 = vsub.f32 %v1591, %v1598
        %v1600 = vmul.f32 %v1599, 1.442695
        %v1601 = vpow.pop %v1600
        %v1602 = vsel %vm748, %v1601, 0.0
        %1603 = vadd.xlane.f32.xlu0 %v1602
        %v1604 = vpop.xlane.xlu0 %1603
        %v1605 = vrcp.pop %v1604
        %v1606 = vmul.f32 %v1601, %v1605
        %v1607 = vpack.c.bf16 %v1606, %v1606
        %1608 = vrot.lane.b32.xlu0 %v1205, 40
        %v1609 = vpop.permute.xlu0 %1608
        %v1611 = vsel %vm748, %v1607, 0
        %v1614 = vsel %vm812, %v1609, 0
        %1616 = vmatprep.subr.bf16.mxu0 0
        %1617 = vmatpush1.bf16.msra.mxu0 %v1614
        %1618 = vmatprep.subr.bf16.mxu0 0
        %1619 = vmatpush1.bf16.msra.mxu0 0
        %1620 = vmatprep.subr.bf16.mxu0 0
        %1621 = vmatpush1.bf16.msra.mxu0 0
        %1622 = vmatprep.subr.bf16.mxu0 0
        %1623 = vmatpush1.bf16.msra.mxu0 0
        %1624 = vmatprep.subr.bf16.mxu0 0
        %1625 = vmatpush1.bf16.msra.mxu0 0
        %1626 = vmatprep.subr.bf16.mxu0 0
        %1627 = vmatpush1.bf16.msra.mxu0 0
        %1628 = vmatprep.subr.bf16.mxu0 0
        %1629 = vmatpush1.bf16.msra.mxu0 0
        %1630 = vmatprep.subr.bf16.mxu0 0
        %1631 = vmatpush1.bf16.msra.mxu0 0
        %1632 = vmatprep.subr.bf16.mxu0 0
        %1633 = vmatpush1.bf16.msra.mxu0 0
        %1634 = vmatprep.subr.bf16.mxu0 0
        %1635 = vmatpush1.bf16.msra.mxu0 0
        %1636 = vmatprep.subr.bf16.mxu0 0
        %1637 = vmatpush1.bf16.msra.mxu0 0
        %1638 = vmatprep.subr.bf16.mxu0 0
        %1639 = vmatpush1.bf16.msra.mxu0 0
        %1640 = vmatprep.subr.bf16.mxu0 0
        %1641 = vmatpush1.bf16.msra.mxu0 0
        %1642 = vmatprep.subr.bf16.mxu0 0
        %1643 = vmatpush1.bf16.msra.mxu0 0
        %1644 = vmatprep.subr.bf16.mxu0 0
        %1645 = vmatpush1.bf16.msra.mxu0 0
        %1646 = vmatprep.subr.bf16.mxu0 0
        %1647 = vmatpush1.bf16.msra.mxu0 0
        %1648 = vmatprep.mubr.bf16.mxu0 0
        %1649 = vmatmul.mubr.bf16.gmra.mrb[0].mxu0 %v1611
        %v1650 = vpop.f32.mrb[0].mxu0
        %v1651 = vadd.f32 0.0, %v1650
        %v1652 = vpop.f32.mrb[0].mxu0
        %v1653 = vpop.f32.mrb[0].mxu0
        %v1654 = vpop.f32.mrb[0].mxu0
        %1655 = vdwg.mxu0
        %1657 = vrot.lane.b32.xlu0 %v1651, 24
        %v1658 = vpop.permute.xlu0 %1657
        %1660 = vst.msk [vmem:[#allocation3 + $0x8] sm:$0xff] %vm1203, %v1658
        %v1661 = vld [vmem:[#allocation3] sm:$0xff]
        %v1662 = vld [vmem:[#allocation3 + $0x8] sm:$0xff]
        %v1663 = vpack.c.bf16 %v1662, %v1661
        %v1664 = vld [vmem:[%s593] sm:$0xf]
        %v1665 = vld [vmem:[%s593 + $0x4] sm:$0xf]
        %v1666 = vld [vmem:[%s593 + $0x8] sm:$0xf]
        %v1667 = vld [vmem:[%s593 + $0xc] sm:$0xf]
        %v1672 = vunpack.c.l.b16 %v1664
        %v1673 = vunpack.c.l.b16 %v1665
        %v1674 = vunpack.c.l.b16 %v1666
        %v1675 = vunpack.c.l.b16 %v1667
        %v1676 = vpack.c.b16 %v1673, %v1672
        %v1677 = vpack.c.b16 %v1675, %v1674
        %v1681 = vsel %vm636, %v1663, 0
        %1683 = vmatprep.subr.bf16.mxu0 0
        %1684 = vmatpush1.bf16.msra.mxu0 %v1676
        %1685 = vmatprep.subr.bf16.mxu0 0
        %1686 = vmatpush1.bf16.msra.mxu0 %v1677
        %1687 = vmatprep.subr.bf16.mxu0 0
        %1688 = vmatpush1.bf16.msra.mxu0 0
        %1689 = vmatprep.subr.bf16.mxu0 0
        %1690 = vmatpush1.bf16.msra.mxu0 0
        %1691 = vmatprep.subr.bf16.mxu0 0
        %1692 = vmatpush1.bf16.msra.mxu0 0
        %1693 = vmatprep.subr.bf16.mxu0 0
        %1694 = vmatpush1.bf16.msra.mxu0 0
        %1695 = vmatprep.subr.bf16.mxu0 0
        %1696 = vmatpush1.bf16.msra.mxu0 0
        %1697 = vmatprep.subr.bf16.mxu0 0
        %1698 = vmatpush1.bf16.msra.mxu0 0
        %1699 = vmatprep.subr.bf16.mxu0 0
        %1700 = vmatpush1.bf16.msra.mxu0 0
        %1701 = vmatprep.subr.bf16.mxu0 0
        %1702 = vmatpush1.bf16.msra.mxu0 0
        %1703 = vmatprep.subr.bf16.mxu0 0
        %1704 = vmatpush1.bf16.msra.mxu0 0
        %1705 = vmatprep.subr.bf16.mxu0 0
        %1706 = vmatpush1.bf16.msra.mxu0 0
        %1707 = vmatprep.subr.bf16.mxu0 0
        %1708 = vmatpush1.bf16.msra.mxu0 0
        %1709 = vmatprep.subr.bf16.mxu0 0
        %1710 = vmatpush1.bf16.msra.mxu0 0
        %1711 = vmatprep.subr.bf16.mxu0 0
        %1712 = vmatpush1.bf16.msra.mxu0 0
        %1713 = vmatprep.subr.bf16.mxu0 0
        %1714 = vmatpush1.bf16.msra.mxu0 0
        %1715 = vmatprep.mubr.bf16.mxu0 0
        %1716 = vmatmul.mubr.bf16.gmra.mrb[0].mxu0 %v1681
        %v1717 = vpop.f32.mrb[0].mxu0
        %v1718 = vadd.f32 0.0, %v1717
        %v1719 = vpop.f32.mrb[0].mxu0
        %v1720 = vpop.f32.mrb[0].mxu0
        %v1721 = vadd.f32 0.0, %v1720
        %v1722 = vpop.f32.mrb[0].mxu0
        %1723 = vdwg.mxu0
        %v1724 = vadd.f32 %v633, %v1718
        %v1725 = vadd.f32 %v634, %v1721
        %v1726 = vld [vmem:[%s596] sm:$0x1]
        %v1728 = vlaneseq
        %v1729 = vshrl.u32 %v1728, 7
        %v1730 = vsub.s32 0, %v1729
        %v1731 = vrot.slane %v1726, %v1730
        %v1733 = vadd.f32 %v1724, %v1731
        %v1734 = vadd.f32 %v1725, %v1731
        %v1735 = vsel %vm636, %v1733, 0.0
        %1736 = vadd.xlane.f32.xlu0 %v1735
        %v1737 = vpop.xlane.xlu0 %1736
        %v1738 = vsel %vm636, %v1734, 0.0
        %1739 = vadd.xlane.f32.xlu0 %v1738
        %v1740 = vpop.xlane.xlu0 %1739
        %v1741 = vmul.f32 %v1737, %v643
        %v1742 = vmul.f32 %v1740, %v643
        %v1743 = vsub.f32 %v1733, %v1741
        %v1744 = vsub.f32 %v1734, %v1742
        %v1745 = vmul.f32 %v1743, %v1743
        %v1746 = vmul.f32 %v1744, %v1744
        %v1747 = vsel %vm636, %v1745, 0.0
        %1748 = vadd.xlane.f32.xlu0 %v1747
        %v1749 = vpop.xlane.xlu0 %1748
        %v1750 = vsel %vm636, %v1746, 0.0
        %1751 = vadd.xlane.f32.xlu0 %v1750
        %v1752 = vpop.xlane.xlu0 %1751
        %v1753 = vmul.f32 %v1749, %v643
        %v1754 = vmul.f32 %v1752, %v643
        %v1755 = vadd.f32 %v1753, 1e-05
        %v1756 = vadd.f32 %v1754, 1e-05
        %v1757 = vrsqrt.pop %v1755
        %v1758 = vrsqrt.pop %v1756
        %v1759 = vmul.f32 %v1743, %v1757
        %v1760 = vmul.f32 %v1744, %v1758
        %v1761 = vlaneseq
        %v1762 = vshrl.u32 %v1761, 7
        %v1763 = vsub.s32 2, %v1762
        %v1764 = vrot.slane %v635, %v1763
        %v1765 = vmul.f32 %v1759, %v1764
        %v1766 = vmul.f32 %v1760, %v1764
        %v1767 = vlaneseq
        %v1768 = vshrl.u32 %v1767, 7
        %v1769 = vsub.s32 3, %v1768
        %v1770 = vrot.slane %v635, %v1769
        %v1771 = vadd.f32 %v1765, %v1770
        %v1772 = vadd.f32 %v1766, %v1770
        %v1773 = vpack.c.bf16 %v1772, %v1771
        %v1774 = vld [vmem:[%s601] sm:$0xf]
        %v1775 = vld [vmem:[%s601 + $0x4] sm:$0xf]
        %v1776 = vld [vmem:[%s601 + $0x8] sm:$0xf]
        %v1777 = vld [vmem:[%s601 + $0xc] sm:$0xf]
        %v1778 = vld [vmem:[%s604] sm:$0x1]
        %v1780 = vlaneseq
        %v1781 = vshrl.u32 %v1780, 7
        %v1782 = vsub.s32 0, %v1781
        %v1783 = vrot.slane %v1778, %v1782
        %v1789 = vunpack.c.l.b16 %v1774
        %v1790 = vunpack.c.l.b16 %v1775
        %v1791 = vunpack.c.l.b16 %v1776
        %v1792 = vunpack.c.l.b16 %v1777
        %v1793 = vpack.c.b16 %v1790, %v1789
        %v1794 = vpack.c.b16 %v1792, %v1791
        %v1798 = vsel %vm636, %v1773, 0
        %1800 = vmatprep.subr.bf16.mxu0 0
        %1801 = vmatpush1.bf16.msra.mxu0 %v1793
        %1802 = vmatprep.subr.bf16.mxu0 0
        %1803 = vmatpush1.bf16.msra.mxu0 %v1794
        %1804 = vmatprep.subr.bf16.mxu0 0
        %1805 = vmatpush1.bf16.msra.mxu0 0
        %1806 = vmatprep.subr.bf16.mxu0 0
        %1807 = vmatpush1.bf16.msra.mxu0 0
        %1808 = vmatprep.subr.bf16.mxu0 0
        %1809 = vmatpush1.bf16.msra.mxu0 0
        %1810 = vmatprep.subr.bf16.mxu0 0
        %1811 = vmatpush1.bf16.msra.mxu0 0
        %1812 = vmatprep.subr.bf16.mxu0 0
        %1813 = vmatpush1.bf16.msra.mxu0 0
        %1814 = vmatprep.subr.bf16.mxu0 0
        %1815 = vmatpush1.bf16.msra.mxu0 0
        %1816 = vmatprep.subr.bf16.mxu0 0
        %1817 = vmatpush1.bf16.msra.mxu0 0
        %1818 = vmatprep.subr.bf16.mxu0 0
        %1819 = vmatpush1.bf16.msra.mxu0 0
        %1820 = vmatprep.subr.bf16.mxu0 0
        %1821 = vmatpush1.bf16.msra.mxu0 0
        %1822 = vmatprep.subr.bf16.mxu0 0
        %1823 = vmatpush1.bf16.msra.mxu0 0
        %1824 = vmatprep.subr.bf16.mxu0 0
        %1825 = vmatpush1.bf16.msra.mxu0 0
        %1826 = vmatprep.subr.bf16.mxu0 0
        %1827 = vmatpush1.bf16.msra.mxu0 0
        %1828 = vmatprep.subr.bf16.mxu0 0
        %1829 = vmatpush1.bf16.msra.mxu0 0
        %1830 = vmatprep.subr.bf16.mxu0 0
        %1831 = vmatpush1.bf16.msra.mxu0 0
        %1832 = vmatprep.mubr.bf16.mxu0 0
        %1833 = vmatmul.mubr.bf16.gmra.mrb[0].mxu0 %v1798
        %v1834 = vpop.f32.mrb[0].mxu0
        %v1835 = vadd.f32 %v1783, %v1834
        %v1836 = vpop.f32.mrb[0].mxu0
        %v1837 = vpop.f32.mrb[0].mxu0
        %v1838 = vadd.f32 %v1783, %v1837
        %v1839 = vpop.f32.mrb[0].mxu0
        %1840 = vdwg.mxu0
        %v1841 = vmul.f32 %v1835, 1.702
        %v1842 = vmul.f32 %v1838, 1.702
        %v1843 = vxor.u32 %v1841, 2147483648
        %v1844 = vxor.u32 %v1842, 2147483648
        %v1845 = vmul.f32 %v1843, 1.442695
        %v1846 = vpow.pop %v1845
        %v1847 = vmul.f32 %v1844, 1.442695
        %v1848 = vpow.pop %v1847
        %v1849 = vadd.f32 %v1846, 1.0
        %v1850 = vadd.f32 %v1848, 1.0
        %v1851 = vrcp.pop %v1849
        %v1852 = vmul.f32 1.0, %v1851
        %v1853 = vrcp.pop %v1850
        %v1854 = vmul.f32 1.0, %v1853
        %v1855 = vmul.f32 %v1835, %v1852
        %v1856 = vmul.f32 %v1838, %v1854
        %v1857 = vpack.c.bf16 %v1856, %v1855
        %v1858 = vld [vmem:[%s609] sm:$0xf]
        %v1859 = vld [vmem:[%s609 + $0x4] sm:$0xf]
        %v1860 = vld [vmem:[%s609 + $0x8] sm:$0xf]
        %v1861 = vld [vmem:[%s609 + $0xc] sm:$0xf]
        %v1862 = vld [vmem:[%s609 + $0x10] sm:$0xf]
        %v1863 = vld [vmem:[%s609 + $0x14] sm:$0xf]
        %v1864 = vld [vmem:[%s609 + $0x18] sm:$0xf]
        %v1865 = vld [vmem:[%s609 + $0x1c] sm:$0xf]
        %v1866 = vld [vmem:[%s609 + $0x20] sm:$0xf]
        %v1867 = vld [vmem:[%s609 + $0x24] sm:$0xf]
        %v1868 = vld [vmem:[%s609 + $0x28] sm:$0xf]
        %v1869 = vld [vmem:[%s609 + $0x2c] sm:$0xf]
        %v1870 = vld [vmem:[%s609 + $0x30] sm:$0xf]
        %v1871 = vld [vmem:[%s609 + $0x34] sm:$0xf]
        %v1872 = vld [vmem:[%s609 + $0x38] sm:$0xf]
        %v1873 = vld [vmem:[%s609 + $0x3c] sm:$0xf]
        %v1890 = vunpack.c.l.b16 %v1858
        %v1891 = vunpack.c.l.b16 %v1859
        %v1892 = vunpack.c.l.b16 %v1860
        %v1893 = vunpack.c.l.b16 %v1861
        %v1894 = vunpack.c.l.b16 %v1862
        %v1895 = vunpack.c.l.b16 %v1863
        %v1896 = vunpack.c.l.b16 %v1864
        %v1897 = vunpack.c.l.b16 %v1865
        %v1898 = vunpack.c.l.b16 %v1866
        %v1899 = vunpack.c.l.b16 %v1867
        %v1900 = vunpack.c.l.b16 %v1868
        %v1901 = vunpack.c.l.b16 %v1869
        %v1902 = vunpack.c.l.b16 %v1870
        %v1903 = vunpack.c.l.b16 %v1871
        %v1904 = vunpack.c.l.b16 %v1872
        %v1905 = vunpack.c.l.b16 %v1873
        %v1906 = vpack.c.b16 %v1891, %v1890
        %v1907 = vpack.c.b16 %v1893, %v1892
        %v1908 = vpack.c.b16 %v1895, %v1894
        %v1909 = vpack.c.b16 %v1897, %v1896
        %v1910 = vpack.c.b16 %v1899, %v1898
        %v1911 = vpack.c.b16 %v1901, %v1900
        %v1912 = vpack.c.b16 %v1903, %v1902
        %v1913 = vpack.c.b16 %v1905, %v1904
        %1922 = vmatprep.subr.bf16.mxu0 0
        %1923 = vmatpush1.bf16.msra.mxu0 %v1906
        %1924 = vmatprep.subr.bf16.mxu0 0
        %1925 = vmatpush1.bf16.msra.mxu0 %v1907
        %1926 = vmatprep.subr.bf16.mxu0 0
        %1927 = vmatpush1.bf16.msra.mxu0 %v1908
        %1928 = vmatprep.subr.bf16.mxu0 0
        %1929 = vmatpush1.bf16.msra.mxu0 %v1909
        %1930 = vmatprep.subr.bf16.mxu0 0
        %1931 = vmatpush1.bf16.msra.mxu0 %v1910
        %1932 = vmatprep.subr.bf16.mxu0 0
        %1933 = vmatpush1.bf16.msra.mxu0 %v1911
        %1934 = vmatprep.subr.bf16.mxu0 0
        %1935 = vmatpush1.bf16.msra.mxu0 %v1912
        %1936 = vmatprep.subr.bf16.mxu0 0
        %1937 = vmatpush1.bf16.msra.mxu0 %v1913
        %1938 = vmatprep.subr.bf16.mxu0 0
        %1939 = vmatpush1.bf16.msra.mxu0 0
        %1940 = vmatprep.subr.bf16.mxu0 0
        %1941 = vmatpush1.bf16.msra.mxu0 0
        %1942 = vmatprep.subr.bf16.mxu0 0
        %1943 = vmatpush1.bf16.msra.mxu0 0
        %1944 = vmatprep.subr.bf16.mxu0 0
        %1945 = vmatpush1.bf16.msra.mxu0 0
        %1946 = vmatprep.subr.bf16.mxu0 0
        %1947 = vmatpush1.bf16.msra.mxu0 0
        %1948 = vmatprep.subr.bf16.mxu0 0
        %1949 = vmatpush1.bf16.msra.mxu0 0
        %1950 = vmatprep.subr.bf16.mxu0 0
        %1951 = vmatpush1.bf16.msra.mxu0 0
        %1952 = vmatprep.subr.bf16.mxu0 0
        %1953 = vmatpush1.bf16.msra.mxu0 0
        %1954 = vmatprep.mubr.bf16.mxu0 0
        %1955 = vmatmul.mubr.bf16.gmra.mrb[0].mxu0 %v1857
        %v1956 = vpop.f32.mrb[0].mxu0
        %v1957 = vadd.f32 0.0, %v1956
        %v1958 = vpop.f32.mrb[0].mxu0
        %v1959 = vpop.f32.mrb[0].mxu0
        %v1960 = vadd.f32 0.0, %v1959
        %v1961 = vpop.f32.mrb[0].mxu0
        %1962 = vdwg.mxu0
        %v1963 = vadd.f32 %v1733, %v1957
        %v1964 = vadd.f32 %v1734, %v1960
        %v1965 = vld [vmem:[%s612] sm:$0x1]
        %v1967 = vlaneseq
        %v1968 = vshrl.u32 %v1967, 7
        %v1969 = vsub.s32 0, %v1968
        %v1970 = vrot.slane %v1965, %v1969
        %v1972 = vadd.f32 %v1963, %v1970
        %v1973 = vadd.f32 %v1964, %v1970
        %1974 = vst.msk [vmem:[#allocation2] sm:$0xff] %vm636, %v1972
        %1975 = vst.msk [vmem:[#allocation2 + $0x8] sm:$0xff] %vm636, %v1973
        %p1976 = scmp.eq.s32.totalorder %s39, 1
        // Predicated region
        $region77: #{text_encoder_pallas.1} parent=71 // pred_check
          %p1977 = pneg %p1976
        $region78: #{text_encoder_pallas.1} parent=71 // pred_check_branch
          %1979 = sbr.rel (%p1977) target = $region80
        $region79: #{text_encoder_pallas.1} parent=71 // pred_region
          %v1980 = vld [vmem:[%s12] sm:$0x3]
          %s1981 = smul.u32 %s38, 2
          %s1982 = sld [smem:[#allocation5 + %s1981]]
          %s1983 = scalar_lea.vmem [#allocation2], %s1982
          %v1984 = vld [vmem:[%s1983] sm:$0x1]
          %vm1985 = vcmask 253952
          %1986 = vst.msk [vmem:[#allocation3] sm:$0x1] %vm1985, %v1984
          %s1987 = sadd.s32 %s1981, 1
          %s1988 = sld [smem:[#allocation5 + %s1987]]
          %s1989 = sadd.s32 %s1988, 8
          %s1990 = scalar_lea.vmem [#allocation2], %s1989
          %v1991 = vld [vmem:[%s1990] sm:$0x1]
          %1992 = vst.msk [vmem:[#allocation3 + $0x1] sm:$0x1] %vm1985, %v1991
          %v1993 = vld [vmem:[#allocation3] sm:$0x3]
          %vm1994 = vcmask 254976
          %v1995 = vsel %vm1994, %v1993, 0.0
          %1996 = vadd.xlane.f32.xlu0 %v1995
          %v1997 = vpop.xlane.xlu0 %1996
          %v1998 = vmul.f32 %v1997, %v643
          %v1999 = vsub.f32 %v1993, %v1998
          %v2000 = vmul.f32 %v1999, %v1999
          %v2001 = vsel %vm1994, %v2000, 0.0
          %2002 = vadd.xlane.f32.xlu0 %v2001
          %v2003 = vpop.xlane.xlu0 %2002
          %v2004 = vmul.f32 %v2003, %v643
          %v2005 = vadd.f32 %v2004, 1e-05
          %v2006 = vrsqrt.pop %v2005
          %v2007 = vmul.f32 %v1999, %v2006
          %v2008 = vlaneseq
          %v2009 = vshrl.u32 %v2008, 7
          %v2010 = vsub.s32 0, %v2009
          %v2011 = vrot.slane %v1980, %v2010
          %v2012 = vmul.f32 %v2007, %v2011
          %v2013 = vlaneseq
          %v2014 = vshrl.u32 %v2013, 7
          %v2015 = vsub.s32 1, %v2014
          %v2016 = vrot.slane %v1980, %v2015
          %v2017 = vadd.f32 %v2012, %v2016
          %v2018 = vpack.c.bf16 %v2017, %v2017
          %v2019 = vld [vmem:[%s13] sm:$0xf]
          %v2020 = vld [vmem:[%s13 + $0x4] sm:$0xf]
          %v2021 = vld [vmem:[%s13 + $0x8] sm:$0xf]
          %v2022 = vld [vmem:[%s13 + $0xc] sm:$0xf]
          %v2027 = vunpack.c.l.b16 %v2019
          %v2028 = vunpack.c.l.b16 %v2020
          %v2029 = vunpack.c.l.b16 %v2021
          %v2030 = vunpack.c.l.b16 %v2022
          %v2031 = vpack.c.b16 %v2028, %v2027
          %v2032 = vpack.c.b16 %v2030, %v2029
          %v2036 = vsel %vm636, %v2018, 0
          %2038 = vmatprep.subr.bf16.mxu0 0
          %2039 = vmatpush1.bf16.msra.mxu0 %v2031
          %2040 = vmatprep.subr.bf16.mxu0 0
          %2041 = vmatpush1.bf16.msra.mxu0 %v2032
          %2042 = vmatprep.subr.bf16.mxu0 0
          %2043 = vmatpush1.bf16.msra.mxu0 0
          %2044 = vmatprep.subr.bf16.mxu0 0
          %2045 = vmatpush1.bf16.msra.mxu0 0
          %2046 = vmatprep.subr.bf16.mxu0 0
          %2047 = vmatpush1.bf16.msra.mxu0 0
          %2048 = vmatprep.subr.bf16.mxu0 0
          %2049 = vmatpush1.bf16.msra.mxu0 0
          %2050 = vmatprep.subr.bf16.mxu0 0
          %2051 = vmatpush1.bf16.msra.mxu0 0
          %2052 = vmatprep.subr.bf16.mxu0 0
          %2053 = vmatpush1.bf16.msra.mxu0 0
          %2054 = vmatprep.subr.bf16.mxu0 0
          %2055 = vmatpush1.bf16.msra.mxu0 0
          %2056 = vmatprep.subr.bf16.mxu0 0
          %2057 = vmatpush1.bf16.msra.mxu0 0
          %2058 = vmatprep.subr.bf16.mxu0 0
          %2059 = vmatpush1.bf16.msra.mxu0 0
          %2060 = vmatprep.subr.bf16.mxu0 0
          %2061 = vmatpush1.bf16.msra.mxu0 0
          %2062 = vmatprep.subr.bf16.mxu0 0
          %2063 = vmatpush1.bf16.msra.mxu0 0
          %2064 = vmatprep.subr.bf16.mxu0 0
          %2065 = vmatpush1.bf16.msra.mxu0 0
          %2066 = vmatprep.subr.bf16.mxu0 0
          %2067 = vmatpush1.bf16.msra.mxu0 0
          %2068 = vmatprep.subr.bf16.mxu0 0
          %2069 = vmatpush1.bf16.msra.mxu0 0
          %2070 = vmatprep.mubr.bf16.mxu0 0
          %2071 = vmatmul.mubr.bf16.gmra.mrb[0].mxu0 %v2036
          %v2072 = vpop.f32.mrb[0].mxu0
          %v2073 = vadd.f32 0.0, %v2072
          %v2074 = vpop.f32.mrb[0].mxu0
          %v2075 = vpop.f32.mrb[0].mxu0
          %v2076 = vpop.f32.mrb[0].mxu0
          %2077 = vdwg.mxu0
          %vm2078 = vcmask 123904
          %2079 = vst.msk [vmem:[%s570] sm:$0x3] %vm2078, %v2073
        $region80: #{text_encoder_pallas.1} parent=71 // pred_fallthru
          _
        %s2080 = sand.u32 %s377, 1
        %s2081 = scalar_lea.sflag [#allocation7], %s2080
        %s2082 = sand.u32 %s377, 1
        %s2083 = smul.addr %s2082, 2
        %s2084 = scalar_lea.vmem [#allocation6], %s2083
        // Predicated region
        $region81: #{text_encoder_pallas.1} parent=71 // pred_check
          %p2085 = pneg %p387
        $region82: #{text_encoder_pallas.1} parent=71 // pred_check_branch
          %2087 = sbr.rel (%p2085) target = $region84
        $region83: #{text_encoder_pallas.1} parent=71 // pred_region
          %s2089 = ssub.s32 32, 32
          %2090 = vsyncadd %s2081, %s2089
          %s2091 = smul.addr %s38, 32
          %s2092 = scalar_lea.hbm %s14, %s2091
          %s2094 = sshll.u32 %s2084, 4
          %s2095 = int_to_ptr.vmem [resolvable:$true] %s2094
          %2097 = dma.vmem_to_hbm [thread:$0]  %s2095, 32, %s2092, %s2081
        $region84: #{text_encoder_pallas.1} parent=71 // pred_fallthru
          _
      $region72: #{text_encoder_pallas.1} parent=5 // pred_fallthru
        _
      %p2098 = scmp.le.s32.totalorder 2, %s29
      // Predicated region
      $region85: #{text_encoder_pallas.1} parent=5 // pred_check
        %p2099 = pneg %p2098
      $region86: #{text_encoder_pallas.1} parent=5 // pred_check_branch
        %2101 = sbr.rel (%p2099) target = $region88
      $region87: #{text_encoder_pallas.1} parent=5 // pred_region
        %s2102 = ssub.s32 %s29, 2
        // Predicated region
        $region89: #{text_encoder_pallas.1} parent=87 // pred_check
          %p2103 = pneg %p393
        $region90: #{text_encoder_pallas.1} parent=87 // pred_check_branch
          %2105 = sbr.rel (%p2103) target = $region92
        $region91: #{text_encoder_pallas.1} parent=87 // pred_region
          %s2106 = sand.u32 %s378, 1
          %s2107 = scalar_lea.sflag [#allocation7], %s2106
          %s2108 = sand.u32 %s378, 1
          %s2109 = smul.addr %s2108, 2
          %s2110 = scalar_lea.vmem [#allocation6], %s2109
          %2111 = dma.done %s2107, 32
        $region92: #{text_encoder_pallas.1} parent=87 // pred_fallthru
          _
      $region88: #{text_encoder_pallas.1} parent=5 // pred_fallthru
        _
    $region6: #{text_encoder_pallas.1} parent=1 // loop_footer
      %s33 = sadd.s32 1, %s29
    $region7: #{text_encoder_pallas.1} parent=1 // loop_footer_branch
      %28 = sbr.rel target = $region3
    $region8: #{text_encoder_pallas.1} parent=1 // loop_exit
      _
    %2112 = vsyncpa [#allocation7], 1
    %s2113 = scalar_lea.sflag [#allocation7], 1
    %2114 = vsyncpa %s2113, 1

</llo_original>
